<compile_context>
chip_gen: v7x
topology: tpu7x:2x2x1
jax: 0.10.0
libtpu: 0.0.40
codegen_flags: <defaults>
</compile_context>

<pallas_src>
import math

import jax
import jax.numpy as jnp
import numpy as np
from jax import lax
from jax.experimental import pallas as pl
from jax.experimental.pallas import tpu as pltpu

# ----------------------------- configuration --------------------------------
B = 2            # batch
T = 8            # sequence / time length
D_IN = 16        # observation_shape[1]
ACTION_SIZE = 4
EMBED = 32       # embed_size
HIDDEN = 64      # hidden_size
TIME_LEN = T     # pos-embedding table length
NUM_BLOCKS = 2
NUM_HEADS = 2
HEAD_DIM = EMBED // NUM_HEADS
LN_EPS = 1e-8
NEG_INF = -1e30
PACK_COLS = 128  # lane width; anything narrower pads to 128 lanes in VMEM anyway


# --------------------------- packed-parameter layout --------------------------
def _param_layout():
    """Static list of (name, (rows, cols)) describing every parameter."""
    layout = [("pre_wT", (D_IN, EMBED)),
              ("pre_b", (1, EMBED)),
              ("pos", (TIME_LEN, EMBED))]
    for i in range(NUM_BLOCKS):
        layout += [(f"l1w{i}", (1, EMBED)), (f"l1b{i}", (1, EMBED)),
                   (f"ipwT{i}", (EMBED, 3 * EMBED)), (f"ipb{i}", (1, 3 * EMBED)),
                   (f"opwT{i}", (EMBED, EMBED)), (f"opb{i}", (1, EMBED)),
                   (f"l2w{i}", (1, EMBED)), (f"l2b{i}", (1, EMBED)),
                   (f"f1wT{i}", (EMBED, HIDDEN)), (f"f1b{i}", (1, HIDDEN)),
                   (f"f2wT{i}", (HIDDEN, EMBED)), (f"f2b{i}", (1, EMBED))]
    layout += [("llw", (1, EMBED)), ("llb", (1, EMBED)),
               ("awT", (ACTION_SIZE, EMBED)), ("ab", (1, EMBED)),
               ("cwT", (2 * EMBED, HIDDEN)), ("cb", (1, HIDDEN))]
    return layout


def _param_offsets(layout):
    """Assign each parameter an 8-sublane-aligned row offset in the packed buffer."""
    offsets, row = {}, 0
    for name, (r, c) in layout:
        offsets[name] = (row, r, c)
        row += ((r + 7) // 8) * 8
    return offsets, row


def pack_params(params):
    """Pack the parameter dict into a single (rows, 128) f32 buffer."""
    layout = _param_layout()
    offsets, total_rows = _param_offsets(layout)
    buf = np.zeros((total_rows, PACK_COLS), np.float32)
    for name, (r, c) in layout:
        off = offsets[name][0]
        buf[off:off + r, :c] = np.asarray(params[name], np.float32)
    return jnp.asarray(buf), offsets


# --------------------------- shared math (traced) ----------------------------
def _mm(x, w, b=None):
    """Dense layer: bf16 matmul operands, f32 accumulation, f32 bias add."""
    lead = x.shape[:-1]
    x2 = x.reshape((-1, x.shape[-1])).astype(jnp.bfloat16)
    y = jnp.dot(x2, w.astype(jnp.bfloat16), preferred_element_type=jnp.float32)
    if b is not None:
        y = y + b
    return y.reshape(lead + (w.shape[1],))


def _layer_norm(x, w, b):
    mu = jnp.mean(x, axis=-1, keepdims=True)
    var = jnp.mean((x - mu) ** 2, axis=-1, keepdims=True)
    return (x - mu) * lax.rsqrt(var + LN_EPS) * w + b


def _softmax_last(s, recip):
    s = s - jnp.max(s, axis=-1, keepdims=True)
    p = jnp.exp(s)
    return p * recip(jnp.sum(p, axis=-1, keepdims=True))


def forward_math(x, action, P, recip):
    """Full forward pass. P(name) returns a parameter (lazy load in-kernel);
    recip(d) is the reciprocal used for softmax normalization."""
    x = x.astype(jnp.float32)
    action = action.astype(jnp.float32)
    t = x.shape[1]

    # timeline mask: True where the raw observation row sums to non-zero
    mask = (jnp.sum(x, axis=-1, keepdims=True) != 0).astype(jnp.float32)  # (B,T,1)

    h = _mm(x, P("pre_wT"), P("pre_b"))          # pre_layer: (B,T,E)
    h = h + P("pos")[:t]                         # positional embedding (dropout = id)
    h = h * mask

    # causal attention mask: disallow attending to future positions
    rows = lax.broadcasted_iota(jnp.int32, (t, t), 0)
    cols = lax.broadcasted_iota(jnp.int32, (t, t), 1)
    allowed = cols <= rows
    scale = 1.0 / math.sqrt(HEAD_DIM)

    for i in range(NUM_BLOCKS):
        q_in = _layer_norm(h, P(f"l1w{i}"), P(f"l1b{i}"))   # Q = attn_layer_norm(x)

        ipw = P(f"ipwT{i}")                                 # (E, 3E), lazily loaded
        ipb = P(f"ipb{i}")                                  # (1, 3E)
        q = _mm(q_in, ipw[:, :EMBED], ipb[:, :EMBED])       # (B,T,E)
        kv = _mm(h, ipw[:, EMBED:], ipb[:, EMBED:])         # fused K,V: (B,T,2E)
        k = kv[..., :EMBED]
        v = kv[..., EMBED:]

        opw = P(f"opwT{i}")                                 # (E, E)
        attn = None
        for hh in range(NUM_HEADS):
            sl = slice(hh * HEAD_DIM, (hh + 1) * HEAD_DIM)
            qh = q[..., sl].astype(jnp.bfloat16)
            kh = k[..., sl].astype(jnp.bfloat16)
            vh = v[..., sl].astype(jnp.bfloat16)
            s = jnp.einsum('bqd,bkd->bqk', qh, kh,
                           preferred_element_type=jnp.float32) * scale
            s = jnp.where(allowed, s, NEG_INF)
            p = _softmax_last(s, recip)
            ctx = jnp.einsum('bqk,bkd->bqd', p.astype(jnp.bfloat16), vh,
                             preferred_element_type=jnp.float32)      # (B,T,Dh)
            # fold out_proj per head: out_proj(concat(heads)) == sum_h ctx_h @ W_o[h]
            part = _mm(ctx, opw[sl, :])
            attn = part if attn is None else attn + part
        attn = attn + P(f"opb{i}")

        h = q_in + attn                                     # x = Q + attn_outputs
        h = _layer_norm(h, P(f"l2w{i}"), P(f"l2b{i}"))      # forward_layer_norm
        ffn = jnp.maximum(_mm(h, P(f"f1wT{i}"), P(f"f1b{i}")), 0.0)
        h = h + _mm(ffn, P(f"f2wT{i}"), P(f"f2b{i}"))       # PointWiseFeedForward residual
        h = h * mask

    enc = _layer_norm(h, P("llw"), P("llb"))[:, t - 1, :]          # (B, E)
    a = jnp.maximum(_mm(action, P("awT"), P("ab")), 0.0)           # (B, E)
    cat = jnp.concatenate([enc, a], axis=1)                        # (B, 2E)
    out = jnp.maximum(_mm(cat, P("cwT"), P("cb")), 0.0)            # (B, H)
    return out


# ------------------------------- Pallas kernel -------------------------------
def _make_kernel(offsets):
    def kernel(x_ref, a_ref, p_ref, o_ref):
        def P(name):
            off, r, c = offsets[name]          # static offsets -> cheap VMEM slice+load
            return p_ref[off:off + r, :c]

        out = forward_math(x_ref[...], a_ref[...], P,
                           lambda d: pl.reciprocal(d, approx=True))
        o_ref[...] = out.astype(o_ref.dtype)
    return kernel


def _cost_estimate(packed_size):
    per_block = (2 * B * T * EMBED * EMBED            # Q projection
                 + 2 * B * T * EMBED * 2 * EMBED      # fused K,V projection
                 + 2 * 2 * B * T * T * EMBED          # scores + context (all heads)
                 + 2 * B * T * EMBED * EMBED          # out_proj
                 + 2 * 2 * B * T * EMBED * HIDDEN)    # FFN
    flops = (2 * B * T * D_IN * EMBED + NUM_BLOCKS * per_block
             + 2 * B * ACTION_SIZE * EMBED + 2 * B * 2 * EMBED * HIDDEN)
    transcendentals = (NUM_BLOCKS * NUM_HEADS * B * T * T      # exp
                       + (2 * NUM_BLOCKS + 1) * B * T          # rsqrt
                       + NUM_BLOCKS * NUM_HEADS * B * T)       # reciprocal
    bytes_accessed = 4 * (B * T * D_IN + B * ACTION_SIZE + packed_size + B * HIDDEN)
    return pl.CostEstimate(flops=flops, transcendentals=transcendentals,
                           bytes_accessed=bytes_accessed)


def transformer_encoder_with_action(x, action, packed, offsets):
    # Shapes are tiny (<1 MiB total), so everything is staged whole into VMEM
    # and the full forward pass runs in one kernel invocation (grid = ()).
    # TODO(synk): for batch >> 2 on v7x, add a parallel grid over batch so the
    # second TensorCore is used.
    vmem = pl.BlockSpec(memory_space=pltpu.MemorySpace.VMEM)
    return pl.pallas_call(
        _make_kernel(offsets),
        out_shape=jax.ShapeDtypeStruct((x.shape[0], HIDDEN), jnp.float32),
        in_specs=[vmem, vmem, vmem],
        out_specs=vmem,
        cost_estimate=_cost_estimate(packed.size),
    )(x, action, packed)


# ------------------------------ parameter init --------------------------------
def init_params(key):
    keys = iter(jax.random.split(key, 64))

    def u(shape, fan_in):
        lim = 1.0 / math.sqrt(fan_in)
        return jax.random.uniform(next(keys), shape, jnp.float32, -lim, lim)

    p = {"pre_wT": u((D_IN, EMBED), D_IN),
         "pre_b": u((1, EMBED), D_IN),
         "pos": jax.random.normal(next(keys), (TIME_LEN, EMBED), jnp.float32)}
    for i in range(NUM_BLOCKS):
        p[f"l1w{i}"] = jnp.ones((1, EMBED), jnp.float32)
        p[f"l1b{i}"] = jnp.zeros((1, EMBED), jnp.float32)
        p[f"ipwT{i}"] = u((EMBED, 3 * EMBED), EMBED)        # in_proj_weight^T
        p[f"ipb{i}"] = u((1, 3 * EMBED), EMBED)             # in_proj_bias
        p[f"opwT{i}"] = u((EMBED, EMBED), EMBED)            # out_proj.weight^T
        p[f"opb{i}"] = u((1, EMBED), EMBED)
        p[f"l2w{i}"] = jnp.ones((1, EMBED), jnp.float32)
        p[f"l2b{i}"] = jnp.zeros((1, EMBED), jnp.float32)
        p[f"f1wT{i}"] = u((EMBED, HIDDEN), EMBED)           # ffn Linear1^T
        p[f"f1b{i}"] = u((1, HIDDEN), EMBED)
        p[f"f2wT{i}"] = u((HIDDEN, EMBED), HIDDEN)          # ffn Linear2^T
        p[f"f2b{i}"] = u((1, EMBED), HIDDEN)
    p["llw"] = jnp.ones((1, EMBED), jnp.float32)
    p["llb"] = jnp.zeros((1, EMBED), jnp.float32)
    p["awT"] = u((ACTION_SIZE, EMBED), ACTION_SIZE)         # fc_action
    p["ab"] = u((1, EMBED), ACTION_SIZE)
    p["cwT"] = u((2 * EMBED, HIDDEN), 2 * EMBED)            # fc_concat
    p["cb"] = u((1, HIDDEN), 2 * EMBED)
    return p


# ---------------------------------- main --------------------------------------
if __name__ == "__main__":
    root = jax.random.PRNGKey(0)
    kx, ka, kp = jax.random.split(root, 3)

    x = jax.random.normal(kx, (B, T, D_IN), jnp.float32)
    action = jax.random.normal(ka, (B, ACTION_SIZE), jnp.float32)
    params = init_params(kp)
    packed, offsets = pack_params(params)

    out = transformer_encoder_with_action(x, action, packed, offsets)
    out = jax.block_until_ready(out)

    # pure-JAX reference (identical math, run through XLA instead of Pallas)
    ref = forward_math(x, action, lambda name: params[name], lambda d: 1.0 / d)
    np.testing.assert_allclose(np.asarray(out), np.asarray(ref),
                               rtol=1e-2, atol=1e-2)
    assert out.shape == (B, HIDDEN) and out.dtype == jnp.float32

    print("KERNEL_OK")
</pallas_src>

<mosaic_0001>
module attributes {stable_mosaic.version = 11 : i64} {
  func.func @kernel(%arg0: memref<2x8x16xf32, #tpu.memory_space<vmem>>, %arg1: memref<2x4xf32, #tpu.memory_space<vmem>>, %arg2: memref<584x128xf32, #tpu.memory_space<vmem>>, %arg3: memref<2x64xf32, #tpu.memory_space<vmem>>) attributes {dimension_semantics = [], scalar_prefetch = 0 : i64, scratch_operands = 0 : i64, tpu.core_type = #tpu.core_type<tc>} {
    %c0 = arith.constant 0 : index
    %c0_0 = arith.constant 0 : index
    %c0_1 = arith.constant 0 : index
    %0 = vector.load %arg0[%c0, %c0_0, %c0_1] : memref<2x8x16xf32, #tpu.memory_space<vmem>>, vector<2x8x16xf32>
    %c0_2 = arith.constant 0 : index
    %c0_3 = arith.constant 0 : index
    %1 = vector.load %arg1[%c0_2, %c0_3] : memref<2x4xf32, #tpu.memory_space<vmem>>, vector<2x4xf32>
    %cst = arith.constant dense<0.000000e+00> : vector<2x8xf32>
    %2 = vector.multi_reduction <add>, %0, %cst [2] : vector<2x8x16xf32> to vector<2x8xf32>
    %3 = vector.shape_cast %2 : vector<2x8xf32> to vector<2x8x1xf32>
    %cst_4 = arith.constant 0.000000e+00 : f32
    %4 = vector.broadcast %cst_4 : f32 to vector<2x8x1xf32>
    %5 = arith.cmpf one, %3, %4 : vector<2x8x1xf32>
    %6 = arith.extui %5 : vector<2x8x1xi1> to vector<2x8x1xi32>
    %7 = arith.sitofp %6 : vector<2x8x1xi32> to vector<2x8x1xf32>
    %c0_5 = arith.constant 0 : index
    %c0_6 = arith.constant 0 : index
    %8 = vector.load %arg2[%c0_5, %c0_6] : memref<584x128xf32, #tpu.memory_space<vmem>>, vector<16x32xf32>
    %c16 = arith.constant 16 : index
    %c0_7 = arith.constant 0 : index
    %9 = vector.load %arg2[%c16, %c0_7] : memref<584x128xf32, #tpu.memory_space<vmem>>, vector<1x32xf32>
    %10 = vector.shape_cast %0 : vector<2x8x16xf32> to vector<16x16xf32>
    %11 = arith.truncf %10 : vector<16x16xf32> to vector<16x16xbf16>
    %12 = arith.truncf %8 : vector<16x32xf32> to vector<16x32xbf16>
    %cst_8 = arith.constant dense<0.000000e+00> : vector<16x32xf32>
    %13 = tpu.matmul %11, %12, %cst_8 {dimension_numbers = #tpu.dot_dimension_numbers<[1], [0], [0], [1], [0, 0, 1, 1], [], []>} : vector<16x16xbf16>, vector<16x32xbf16>, vector<16x32xf32> -> vector<16x32xf32>
    %14 = vector.broadcast %9 : vector<1x32xf32> to vector<16x32xf32>
    %15 = arith.addf %13, %14 : vector<16x32xf32>
    %16 = vector.shape_cast %15 : vector<16x32xf32> to vector<2x8x32xf32>
    %c24 = arith.constant 24 : index
    %c0_9 = arith.constant 0 : index
    %17 = vector.load %arg2[%c24, %c0_9] : memref<584x128xf32, #tpu.memory_space<vmem>>, vector<8x32xf32>
    %18 = vector.shape_cast %17 : vector<8x32xf32> to vector<1x8x32xf32>
    %19 = vector.broadcast %18 : vector<1x8x32xf32> to vector<2x8x32xf32>
    %20 = arith.addf %16, %19 : vector<2x8x32xf32>
    %21 = vector.broadcast %7 : vector<2x8x1xf32> to vector<2x8x32xf32>
    %22 = arith.mulf %20, %21 : vector<2x8x32xf32>
    %23 = tpu.iota {dimensions = array<i32: 0>} : vector<8x8xi32>
    %24 = tpu.iota {dimensions = array<i32: 1>} : vector<8x8xi32>
    %25 = arith.cmpi sle, %24, %23 : vector<8x8xi32>
    %c32 = arith.constant 32 : index
    %c0_10 = arith.constant 0 : index
    %26 = vector.load %arg2[%c32, %c0_10] : memref<584x128xf32, #tpu.memory_space<vmem>>, vector<1x32xf32>
    %c40 = arith.constant 40 : index
    %c0_11 = arith.constant 0 : index
    %27 = vector.load %arg2[%c40, %c0_11] : memref<584x128xf32, #tpu.memory_space<vmem>>, vector<1x32xf32>
    %cst_12 = arith.constant dense<0.000000e+00> : vector<2x8xf32>
    %28 = vector.multi_reduction <add>, %22, %cst_12 [2] : vector<2x8x32xf32> to vector<2x8xf32>
    %29 = vector.shape_cast %28 : vector<2x8xf32> to vector<2x8x1xf32>
    %cst_13 = arith.constant 3.200000e+01 : f32
    %30 = vector.broadcast %cst_13 : f32 to vector<2x8x1xf32>
    %31 = arith.divf %29, %30 : vector<2x8x1xf32>
    %32 = vector.broadcast %31 : vector<2x8x1xf32> to vector<2x8x32xf32>
    %33 = arith.subf %22, %32 : vector<2x8x32xf32>
    %34 = arith.mulf %33, %33 : vector<2x8x32xf32>
    %cst_14 = arith.constant dense<0.000000e+00> : vector<2x8xf32>
    %35 = vector.multi_reduction <add>, %34, %cst_14 [2] : vector<2x8x32xf32> to vector<2x8xf32>
    %36 = vector.shape_cast %35 : vector<2x8xf32> to vector<2x8x1xf32>
    %cst_15 = arith.constant 3.200000e+01 : f32
    %37 = vector.broadcast %cst_15 : f32 to vector<2x8x1xf32>
    %38 = arith.divf %36, %37 : vector<2x8x1xf32>
    %39 = vector.broadcast %31 : vector<2x8x1xf32> to vector<2x8x32xf32>
    %40 = arith.subf %22, %39 : vector<2x8x32xf32>
    %cst_16 = arith.constant 9.99999993E-9 : f32
    %41 = vector.broadcast %cst_16 : f32 to vector<2x8x1xf32>
    %42 = arith.addf %38, %41 : vector<2x8x1xf32>
    %43 = math.rsqrt %42 : vector<2x8x1xf32>
    %44 = vector.broadcast %43 : vector<2x8x1xf32> to vector<2x8x32xf32>
    %45 = arith.mulf %40, %44 : vector<2x8x32xf32>
    %46 = vector.shape_cast %26 : vector<1x32xf32> to vector<1x1x32xf32>
    %47 = vector.broadcast %46 : vector<1x1x32xf32> to vector<2x8x32xf32>
    %48 = arith.mulf %45, %47 : vector<2x8x32xf32>
    %49 = vector.shape_cast %27 : vector<1x32xf32> to vector<1x1x32xf32>
    %50 = vector.broadcast %49 : vector<1x1x32xf32> to vector<2x8x32xf32>
    %51 = arith.addf %48, %50 : vector<2x8x32xf32>
    %c48 = arith.constant 48 : index
    %c0_17 = arith.constant 0 : index
    %52 = vector.load %arg2[%c48, %c0_17] : memref<584x128xf32, #tpu.memory_space<vmem>>, vector<32x96xf32>
    %c80 = arith.constant 80 : index
    %c0_18 = arith.constant 0 : index
    %53 = vector.load %arg2[%c80, %c0_18] : memref<584x128xf32, #tpu.memory_space<vmem>>, vector<1x96xf32>
    %54 = vector.extract_strided_slice %52 {offsets = [0, 0], sizes = [32, 32], strides = [1, 1]} : vector<32x96xf32> to vector<32x32xf32>
    %55 = vector.extract_strided_slice %53 {offsets = [0, 0], sizes = [1, 32], strides = [1, 1]} : vector<1x96xf32> to vector<1x32xf32>
    %56 = vector.shape_cast %51 : vector<2x8x32xf32> to vector<16x32xf32>
    %57 = arith.truncf %56 : vector<16x32xf32> to vector<16x32xbf16>
    %58 = arith.truncf %54 : vector<32x32xf32> to vector<32x32xbf16>
    %cst_19 = arith.constant dense<0.000000e+00> : vector<16x32xf32>
    %59 = tpu.matmul %57, %58, %cst_19 {dimension_numbers = #tpu.dot_dimension_numbers<[1], [0], [0], [1], [0, 0, 1, 1], [], []>} : vector<16x32xbf16>, vector<32x32xbf16>, vector<16x32xf32> -> vector<16x32xf32>
    %60 = vector.broadcast %55 : vector<1x32xf32> to vector<16x32xf32>
    %61 = arith.addf %59, %60 : vector<16x32xf32>
    %62 = vector.shape_cast %61 : vector<16x32xf32> to vector<2x8x32xf32>
    %63 = vector.extract_strided_slice %52 {offsets = [0, 32], sizes = [32, 64], strides = [1, 1]} : vector<32x96xf32> to vector<32x64xf32>
    %64 = vector.extract_strided_slice %53 {offsets = [0, 32], sizes = [1, 64], strides = [1, 1]} : vector<1x96xf32> to vector<1x64xf32>
    %65 = vector.shape_cast %22 : vector<2x8x32xf32> to vector<16x32xf32>
    %66 = arith.truncf %65 : vector<16x32xf32> to vector<16x32xbf16>
    %67 = arith.truncf %63 : vector<32x64xf32> to vector<32x64xbf16>
    %cst_20 = arith.constant dense<0.000000e+00> : vector<16x64xf32>
    %68 = tpu.matmul %66, %67, %cst_20 {dimension_numbers = #tpu.dot_dimension_numbers<[1], [0], [0], [1], [0, 0, 1, 1], [], []>} : vector<16x32xbf16>, vector<32x64xbf16>, vector<16x64xf32> -> vector<16x64xf32>
    %69 = vector.broadcast %64 : vector<1x64xf32> to vector<16x64xf32>
    %70 = arith.addf %68, %69 : vector<16x64xf32>
    %71 = vector.shape_cast %70 : vector<16x64xf32> to vector<2x8x64xf32>
    %72 = vector.extract_strided_slice %71 {offsets = [0, 0, 0], sizes = [2, 8, 32], strides = [1, 1, 1]} : vector<2x8x64xf32> to vector<2x8x32xf32>
    %73 = vector.extract_strided_slice %71 {offsets = [0, 0, 32], sizes = [2, 8, 32], strides = [1, 1, 1]} : vector<2x8x64xf32> to vector<2x8x32xf32>
    %c88 = arith.constant 88 : index
    %c0_21 = arith.constant 0 : index
    %74 = vector.load %arg2[%c88, %c0_21] : memref<584x128xf32, #tpu.memory_space<vmem>>, vector<32x32xf32>
    %75 = vector.extract_strided_slice %62 {offsets = [0, 0, 0], sizes = [2, 8, 16], strides = [1, 1, 1]} : vector<2x8x32xf32> to vector<2x8x16xf32>
    %76 = arith.truncf %75 : vector<2x8x16xf32> to vector<2x8x16xbf16>
    %77 = vector.extract_strided_slice %72 {offsets = [0, 0, 0], sizes = [2, 8, 16], strides = [1, 1, 1]} : vector<2x8x32xf32> to vector<2x8x16xf32>
    %78 = arith.truncf %77 : vector<2x8x16xf32> to vector<2x8x16xbf16>
    %79 = vector.extract_strided_slice %73 {offsets = [0, 0, 0], sizes = [2, 8, 16], strides = [1, 1, 1]} : vector<2x8x32xf32> to vector<2x8x16xf32>
    %80 = arith.truncf %79 : vector<2x8x16xf32> to vector<2x8x16xbf16>
    "tpu.trace_start"() <{level = 10 : i32, message = "bqd,bkd->bqk"}> : () -> ()
    %cst_22 = arith.constant dense<0.000000e+00> : vector<2x8x8xf32>
    %81 = tpu.matmul %76, %78, %cst_22 {dimension_numbers = #tpu.dot_dimension_numbers<[2], [2], [1], [1], [0, 0, 0, 1, 1, 1], [0], [0]>} : vector<2x8x16xbf16>, vector<2x8x16xbf16>, vector<2x8x8xf32> -> vector<2x8x8xf32>
    "tpu.trace_stop"() : () -> ()
    %cst_23 = arith.constant 2.500000e-01 : f32
    %82 = vector.broadcast %cst_23 : f32 to vector<2x8x8xf32>
    %83 = arith.mulf %81, %82 : vector<2x8x8xf32>
    %cst_24 = arith.constant -1.000000e+30 : f32
    %84 = vector.shape_cast %25 : vector<8x8xi1> to vector<1x8x8xi1>
    %85 = vector.broadcast %84 : vector<1x8x8xi1> to vector<2x8x8xi1>
    %86 = vector.broadcast %cst_24 : f32 to vector<2x8x8xf32>
    %87 = arith.select %85, %83, %86 : vector<2x8x8xi1>, vector<2x8x8xf32>
    %cst_25 = arith.constant dense<0xFF800000> : vector<2x8xf32>
    %88 = vector.multi_reduction <maximumf>, %87, %cst_25 [2] : vector<2x8x8xf32> to vector<2x8xf32>
    %89 = vector.shape_cast %88 : vector<2x8xf32> to vector<2x8x1xf32>
    %90 = vector.broadcast %89 : vector<2x8x1xf32> to vector<2x8x8xf32>
    %91 = arith.subf %87, %90 : vector<2x8x8xf32>
    %92 = math.exp %91 : vector<2x8x8xf32>
    %cst_26 = arith.constant dense<0.000000e+00> : vector<2x8xf32>
    %93 = vector.multi_reduction <add>, %92, %cst_26 [2] : vector<2x8x8xf32> to vector<2x8xf32>
    %94 = vector.shape_cast %93 : vector<2x8xf32> to vector<2x8x1xf32>
    %95 = tpu.reciprocal %94 {approx = true} : vector<2x8x1xf32> -> vector<2x8x1xf32>
    %96 = vector.broadcast %95 : vector<2x8x1xf32> to vector<2x8x8xf32>
    %97 = arith.mulf %92, %96 : vector<2x8x8xf32>
    %98 = arith.truncf %97 : vector<2x8x8xf32> to vector<2x8x8xbf16>
    "tpu.trace_start"() <{level = 10 : i32, message = "bqk,bkd->bqd"}> : () -> ()
    %cst_27 = arith.constant dense<0.000000e+00> : vector<2x8x16xf32>
    %99 = tpu.matmul %98, %80, %cst_27 {dimension_numbers = #tpu.dot_dimension_numbers<[2], [1], [1], [2], [0, 0, 0, 1, 1, 2], [0], [0]>} : vector<2x8x8xbf16>, vector<2x8x16xbf16>, vector<2x8x16xf32> -> vector<2x8x16xf32>
    "tpu.trace_stop"() : () -> ()
    %100 = vector.extract_strided_slice %74 {offsets = [0, 0], sizes = [16, 32], strides = [1, 1]} : vector<32x32xf32> to vector<16x32xf32>
    %101 = vector.shape_cast %99 : vector<2x8x16xf32> to vector<16x16xf32>
    %102 = arith.truncf %101 : vector<16x16xf32> to vector<16x16xbf16>
    %103 = arith.truncf %100 : vector<16x32xf32> to vector<16x32xbf16>
    %cst_28 = arith.constant dense<0.000000e+00> : vector<16x32xf32>
    %104 = tpu.matmul %102, %103, %cst_28 {dimension_numbers = #tpu.dot_dimension_numbers<[1], [0], [0], [1], [0, 0, 1, 1], [], []>} : vector<16x16xbf16>, vector<16x32xbf16>, vector<16x32xf32> -> vector<16x32xf32>
    %105 = vector.shape_cast %104 : vector<16x32xf32> to vector<2x8x32xf32>
    %106 = vector.extract_strided_slice %62 {offsets = [0, 0, 16], sizes = [2, 8, 16], strides = [1, 1, 1]} : vector<2x8x32xf32> to vector<2x8x16xf32>
    %107 = arith.truncf %106 : vector<2x8x16xf32> to vector<2x8x16xbf16>
    %108 = vector.extract_strided_slice %72 {offsets = [0, 0, 16], sizes = [2, 8, 16], strides = [1, 1, 1]} : vector<2x8x32xf32> to vector<2x8x16xf32>
    %109 = arith.truncf %108 : vector<2x8x16xf32> to vector<2x8x16xbf16>
    %110 = vector.extract_strided_slice %73 {offsets = [0, 0, 16], sizes = [2, 8, 16], strides = [1, 1, 1]} : vector<2x8x32xf32> to vector<2x8x16xf32>
    %111 = arith.truncf %110 : vector<2x8x16xf32> to vector<2x8x16xbf16>
    "tpu.trace_start"() <{level = 10 : i32, message = "bqd,bkd->bqk"}> : () -> ()
    %cst_29 = arith.constant dense<0.000000e+00> : vector<2x8x8xf32>
    %112 = tpu.matmul %107, %109, %cst_29 {dimension_numbers = #tpu.dot_dimension_numbers<[2], [2], [1], [1], [0, 0, 0, 1, 1, 1], [0], [0]>} : vector<2x8x16xbf16>, vector<2x8x16xbf16>, vector<2x8x8xf32> -> vector<2x8x8xf32>
    "tpu.trace_stop"() : () -> ()
    %cst_30 = arith.constant 2.500000e-01 : f32
    %113 = vector.broadcast %cst_30 : f32 to vector<2x8x8xf32>
    %114 = arith.mulf %112, %113 : vector<2x8x8xf32>
    %cst_31 = arith.constant -1.000000e+30 : f32
    %115 = vector.shape_cast %25 : vector<8x8xi1> to vector<1x8x8xi1>
    %116 = vector.broadcast %115 : vector<1x8x8xi1> to vector<2x8x8xi1>
    %117 = vector.broadcast %cst_31 : f32 to vector<2x8x8xf32>
    %118 = arith.select %116, %114, %117 : vector<2x8x8xi1>, vector<2x8x8xf32>
    %cst_32 = arith.constant dense<0xFF800000> : vector<2x8xf32>
    %119 = vector.multi_reduction <maximumf>, %118, %cst_32 [2] : vector<2x8x8xf32> to vector<2x8xf32>
    %120 = vector.shape_cast %119 : vector<2x8xf32> to vector<2x8x1xf32>
    %121 = vector.broadcast %120 : vector<2x8x1xf32> to vector<2x8x8xf32>
    %122 = arith.subf %118, %121 : vector<2x8x8xf32>
    %123 = math.exp %122 : vector<2x8x8xf32>
    %cst_33 = arith.constant dense<0.000000e+00> : vector<2x8xf32>
    %124 = vector.multi_reduction <add>, %123, %cst_33 [2] : vector<2x8x8xf32> to vector<2x8xf32>
    %125 = vector.shape_cast %124 : vector<2x8xf32> to vector<2x8x1xf32>
    %126 = tpu.reciprocal %125 {approx = true} : vector<2x8x1xf32> -> vector<2x8x1xf32>
    %127 = vector.broadcast %126 : vector<2x8x1xf32> to vector<2x8x8xf32>
    %128 = arith.mulf %123, %127 : vector<2x8x8xf32>
    %129 = arith.truncf %128 : vector<2x8x8xf32> to vector<2x8x8xbf16>
    "tpu.trace_start"() <{level = 10 : i32, message = "bqk,bkd->bqd"}> : () -> ()
    %cst_34 = arith.constant dense<0.000000e+00> : vector<2x8x16xf32>
    %130 = tpu.matmul %129, %111, %cst_34 {dimension_numbers = #tpu.dot_dimension_numbers<[2], [1], [1], [2], [0, 0, 0, 1, 1, 2], [0], [0]>} : vector<2x8x8xbf16>, vector<2x8x16xbf16>, vector<2x8x16xf32> -> vector<2x8x16xf32>
    "tpu.trace_stop"() : () -> ()
    %131 = vector.extract_strided_slice %74 {offsets = [16, 0], sizes = [16, 32], strides = [1, 1]} : vector<32x32xf32> to vector<16x32xf32>
    %132 = vector.shape_cast %130 : vector<2x8x16xf32> to vector<16x16xf32>
    %133 = arith.truncf %132 : vector<16x16xf32> to vector<16x16xbf16>
    %134 = arith.truncf %131 : vector<16x32xf32> to vector<16x32xbf16>
    %cst_35 = arith.constant dense<0.000000e+00> : vector<16x32xf32>
    %135 = tpu.matmul %133, %134, %cst_35 {dimension_numbers = #tpu.dot_dimension_numbers<[1], [0], [0], [1], [0, 0, 1, 1], [], []>} : vector<16x16xbf16>, vector<16x32xbf16>, vector<16x32xf32> -> vector<16x32xf32>
    %136 = vector.shape_cast %135 : vector<16x32xf32> to vector<2x8x32xf32>
    %137 = arith.addf %105, %136 : vector<2x8x32xf32>
    %c120 = arith.constant 120 : index
    %c0_36 = arith.constant 0 : index
    %138 = vector.load %arg2[%c120, %c0_36] : memref<584x128xf32, #tpu.memory_space<vmem>>, vector<1x32xf32>
    %139 = vector.shape_cast %138 : vector<1x32xf32> to vector<1x1x32xf32>
    %140 = vector.broadcast %139 : vector<1x1x32xf32> to vector<2x8x32xf32>
    %141 = arith.addf %137, %140 : vector<2x8x32xf32>
    %142 = arith.addf %51, %141 : vector<2x8x32xf32>
    %c128 = arith.constant 128 : index
    %c0_37 = arith.constant 0 : index
    %143 = vector.load %arg2[%c128, %c0_37] : memref<584x128xf32, #tpu.memory_space<vmem>>, vector<1x32xf32>
    %c136 = arith.constant 136 : index
    %c0_38 = arith.constant 0 : index
    %144 = vector.load %arg2[%c136, %c0_38] : memref<584x128xf32, #tpu.memory_space<vmem>>, vector<1x32xf32>
    %cst_39 = arith.constant dense<0.000000e+00> : vector<2x8xf32>
    %145 = vector.multi_reduction <add>, %142, %cst_39 [2] : vector<2x8x32xf32> to vector<2x8xf32>
    %146 = vector.shape_cast %145 : vector<2x8xf32> to vector<2x8x1xf32>
    %cst_40 = arith.constant 3.200000e+01 : f32
    %147 = vector.broadcast %cst_40 : f32 to vector<2x8x1xf32>
    %148 = arith.divf %146, %147 : vector<2x8x1xf32>
    %149 = vector.broadcast %148 : vector<2x8x1xf32> to vector<2x8x32xf32>
    %150 = arith.subf %142, %149 : vector<2x8x32xf32>
    %151 = arith.mulf %150, %150 : vector<2x8x32xf32>
    %cst_41 = arith.constant dense<0.000000e+00> : vector<2x8xf32>
    %152 = vector.multi_reduction <add>, %151, %cst_41 [2] : vector<2x8x32xf32> to vector<2x8xf32>
    %153 = vector.shape_cast %152 : vector<2x8xf32> to vector<2x8x1xf32>
    %cst_42 = arith.constant 3.200000e+01 : f32
    %154 = vector.broadcast %cst_42 : f32 to vector<2x8x1xf32>
    %155 = arith.divf %153, %154 : vector<2x8x1xf32>
    %156 = vector.broadcast %148 : vector<2x8x1xf32> to vector<2x8x32xf32>
    %157 = arith.subf %142, %156 : vector<2x8x32xf32>
    %cst_43 = arith.constant 9.99999993E-9 : f32
    %158 = vector.broadcast %cst_43 : f32 to vector<2x8x1xf32>
    %159 = arith.addf %155, %158 : vector<2x8x1xf32>
    %160 = math.rsqrt %159 : vector<2x8x1xf32>
    %161 = vector.broadcast %160 : vector<2x8x1xf32> to vector<2x8x32xf32>
    %162 = arith.mulf %157, %161 : vector<2x8x32xf32>
    %163 = vector.shape_cast %143 : vector<1x32xf32> to vector<1x1x32xf32>
    %164 = vector.broadcast %163 : vector<1x1x32xf32> to vector<2x8x32xf32>
    %165 = arith.mulf %162, %164 : vector<2x8x32xf32>
    %166 = vector.shape_cast %144 : vector<1x32xf32> to vector<1x1x32xf32>
    %167 = vector.broadcast %166 : vector<1x1x32xf32> to vector<2x8x32xf32>
    %168 = arith.addf %165, %167 : vector<2x8x32xf32>
    %c144 = arith.constant 144 : index
    %c0_44 = arith.constant 0 : index
    %169 = vector.load %arg2[%c144, %c0_44] : memref<584x128xf32, #tpu.memory_space<vmem>>, vector<32x64xf32>
    %c176 = arith.constant 176 : index
    %c0_45 = arith.constant 0 : index
    %170 = vector.load %arg2[%c176, %c0_45] : memref<584x128xf32, #tpu.memory_space<vmem>>, vector<1x64xf32>
    %171 = vector.shape_cast %168 : vector<2x8x32xf32> to vector<16x32xf32>
    %172 = arith.truncf %171 : vector<16x32xf32> to vector<16x32xbf16>
    %173 = arith.truncf %169 : vector<32x64xf32> to vector<32x64xbf16>
    %cst_46 = arith.constant dense<0.000000e+00> : vector<16x64xf32>
    %174 = tpu.matmul %172, %173, %cst_46 {dimension_numbers = #tpu.dot_dimension_numbers<[1], [0], [0], [1], [0, 0, 1, 1], [], []>} : vector<16x32xbf16>, vector<32x64xbf16>, vector<16x64xf32> -> vector<16x64xf32>
    %175 = vector.broadcast %170 : vector<1x64xf32> to vector<16x64xf32>
    %176 = arith.addf %174, %175 : vector<16x64xf32>
    %177 = vector.shape_cast %176 : vector<16x64xf32> to vector<2x8x64xf32>
    %cst_47 = arith.constant 0.000000e+00 : f32
    %178 = vector.broadcast %cst_47 : f32 to vector<2x8x64xf32>
    %179 = arith.maximumf %177, %178 : vector<2x8x64xf32>
    %c184 = arith.constant 184 : index
    %c0_48 = arith.constant 0 : index
    %180 = vector.load %arg2[%c184, %c0_48] : memref<584x128xf32, #tpu.memory_space<vmem>>, vector<64x32xf32>
    %c248 = arith.constant 248 : index
    %c0_49 = arith.constant 0 : index
    %181 = vector.load %arg2[%c248, %c0_49] : memref<584x128xf32, #tpu.memory_space<vmem>>, vector<1x32xf32>
    %182 = vector.shape_cast %179 : vector<2x8x64xf32> to vector<16x64xf32>
    %183 = arith.truncf %182 : vector<16x64xf32> to vector<16x64xbf16>
    %184 = arith.truncf %180 : vector<64x32xf32> to vector<64x32xbf16>
    %cst_50 = arith.constant dense<0.000000e+00> : vector<16x32xf32>
    %185 = tpu.matmul %183, %184, %cst_50 {dimension_numbers = #tpu.dot_dimension_numbers<[1], [0], [0], [1], [0, 0, 1, 1], [], []>} : vector<16x64xbf16>, vector<64x32xbf16>, vector<16x32xf32> -> vector<16x32xf32>
    %186 = vector.broadcast %181 : vector<1x32xf32> to vector<16x32xf32>
    %187 = arith.addf %185, %186 : vector<16x32xf32>
    %188 = vector.shape_cast %187 : vector<16x32xf32> to vector<2x8x32xf32>
    %189 = arith.addf %168, %188 : vector<2x8x32xf32>
    %190 = vector.broadcast %7 : vector<2x8x1xf32> to vector<2x8x32xf32>
    %191 = arith.mulf %189, %190 : vector<2x8x32xf32>
    %c256 = arith.constant 256 : index
    %c0_51 = arith.constant 0 : index
    %192 = vector.load %arg2[%c256, %c0_51] : memref<584x128xf32, #tpu.memory_space<vmem>>, vector<1x32xf32>
    %c264 = arith.constant 264 : index
    %c0_52 = arith.constant 0 : index
    %193 = vector.load %arg2[%c264, %c0_52] : memref<584x128xf32, #tpu.memory_space<vmem>>, vector<1x32xf32>
    %cst_53 = arith.constant dense<0.000000e+00> : vector<2x8xf32>
    %194 = vector.multi_reduction <add>, %191, %cst_53 [2] : vector<2x8x32xf32> to vector<2x8xf32>
    %195 = vector.shape_cast %194 : vector<2x8xf32> to vector<2x8x1xf32>
    %cst_54 = arith.constant 3.200000e+01 : f32
    %196 = vector.broadcast %cst_54 : f32 to vector<2x8x1xf32>
    %197 = arith.divf %195, %196 : vector<2x8x1xf32>
    %198 = vector.broadcast %197 : vector<2x8x1xf32> to vector<2x8x32xf32>
    %199 = arith.subf %191, %198 : vector<2x8x32xf32>
    %200 = arith.mulf %199, %199 : vector<2x8x32xf32>
    %cst_55 = arith.constant dense<0.000000e+00> : vector<2x8xf32>
    %201 = vector.multi_reduction <add>, %200, %cst_55 [2] : vector<2x8x32xf32> to vector<2x8xf32>
    %202 = vector.shape_cast %201 : vector<2x8xf32> to vector<2x8x1xf32>
    %cst_56 = arith.constant 3.200000e+01 : f32
    %203 = vector.broadcast %cst_56 : f32 to vector<2x8x1xf32>
    %204 = arith.divf %202, %203 : vector<2x8x1xf32>
    %205 = vector.broadcast %197 : vector<2x8x1xf32> to vector<2x8x32xf32>
    %206 = arith.subf %191, %205 : vector<2x8x32xf32>
    %cst_57 = arith.constant 9.99999993E-9 : f32
    %207 = vector.broadcast %cst_57 : f32 to vector<2x8x1xf32>
    %208 = arith.addf %204, %207 : vector<2x8x1xf32>
    %209 = math.rsqrt %208 : vector<2x8x1xf32>
    %210 = vector.broadcast %209 : vector<2x8x1xf32> to vector<2x8x32xf32>
    %211 = arith.mulf %206, %210 : vector<2x8x32xf32>
    %212 = vector.shape_cast %192 : vector<1x32xf32> to vector<1x1x32xf32>
    %213 = vector.broadcast %212 : vector<1x1x32xf32> to vector<2x8x32xf32>
    %214 = arith.mulf %211, %213 : vector<2x8x32xf32>
    %215 = vector.shape_cast %193 : vector<1x32xf32> to vector<1x1x32xf32>
    %216 = vector.broadcast %215 : vector<1x1x32xf32> to vector<2x8x32xf32>
    %217 = arith.addf %214, %216 : vector<2x8x32xf32>
    %c272 = arith.constant 272 : index
    %c0_58 = arith.constant 0 : index
    %218 = vector.load %arg2[%c272, %c0_58] : memref<584x128xf32, #tpu.memory_space<vmem>>, vector<32x96xf32>
    %c304 = arith.constant 304 : index
    %c0_59 = arith.constant 0 : index
    %219 = vector.load %arg2[%c304, %c0_59] : memref<584x128xf32, #tpu.memory_space<vmem>>, vector<1x96xf32>
    %220 = vector.extract_strided_slice %218 {offsets = [0, 0], sizes = [32, 32], strides = [1, 1]} : vector<32x96xf32> to vector<32x32xf32>
    %221 = vector.extract_strided_slice %219 {offsets = [0, 0], sizes = [1, 32], strides = [1, 1]} : vector<1x96xf32> to vector<1x32xf32>
    %222 = vector.shape_cast %217 : vector<2x8x32xf32> to vector<16x32xf32>
    %223 = arith.truncf %222 : vector<16x32xf32> to vector<16x32xbf16>
    %224 = arith.truncf %220 : vector<32x32xf32> to vector<32x32xbf16>
    %cst_60 = arith.constant dense<0.000000e+00> : vector<16x32xf32>
    %225 = tpu.matmul %223, %224, %cst_60 {dimension_numbers = #tpu.dot_dimension_numbers<[1], [0], [0], [1], [0, 0, 1, 1], [], []>} : vector<16x32xbf16>, vector<32x32xbf16>, vector<16x32xf32> -> vector<16x32xf32>
    %226 = vector.broadcast %221 : vector<1x32xf32> to vector<16x32xf32>
    %227 = arith.addf %225, %226 : vector<16x32xf32>
    %228 = vector.shape_cast %227 : vector<16x32xf32> to vector<2x8x32xf32>
    %229 = vector.extract_strided_slice %218 {offsets = [0, 32], sizes = [32, 64], strides = [1, 1]} : vector<32x96xf32> to vector<32x64xf32>
    %230 = vector.extract_strided_slice %219 {offsets = [0, 32], sizes = [1, 64], strides = [1, 1]} : vector<1x96xf32> to vector<1x64xf32>
    %231 = vector.shape_cast %191 : vector<2x8x32xf32> to vector<16x32xf32>
    %232 = arith.truncf %231 : vector<16x32xf32> to vector<16x32xbf16>
    %233 = arith.truncf %229 : vector<32x64xf32> to vector<32x64xbf16>
    %cst_61 = arith.constant dense<0.000000e+00> : vector<16x64xf32>
    %234 = tpu.matmul %232, %233, %cst_61 {dimension_numbers = #tpu.dot_dimension_numbers<[1], [0], [0], [1], [0, 0, 1, 1], [], []>} : vector<16x32xbf16>, vector<32x64xbf16>, vector<16x64xf32> -> vector<16x64xf32>
    %235 = vector.broadcast %230 : vector<1x64xf32> to vector<16x64xf32>
    %236 = arith.addf %234, %235 : vector<16x64xf32>
    %237 = vector.shape_cast %236 : vector<16x64xf32> to vector<2x8x64xf32>
    %238 = vector.extract_strided_slice %237 {offsets = [0, 0, 0], sizes = [2, 8, 32], strides = [1, 1, 1]} : vector<2x8x64xf32> to vector<2x8x32xf32>
    %239 = vector.extract_strided_slice %237 {offsets = [0, 0, 32], sizes = [2, 8, 32], strides = [1, 1, 1]} : vector<2x8x64xf32> to vector<2x8x32xf32>
    %c312 = arith.constant 312 : index
    %c0_62 = arith.constant 0 : index
    %240 = vector.load %arg2[%c312, %c0_62] : memref<584x128xf32, #tpu.memory_space<vmem>>, vector<32x32xf32>
    %241 = vector.extract_strided_slice %228 {offsets = [0, 0, 0], sizes = [2, 8, 16], strides = [1, 1, 1]} : vector<2x8x32xf32> to vector<2x8x16xf32>
    %242 = arith.truncf %241 : vector<2x8x16xf32> to vector<2x8x16xbf16>
    %243 = vector.extract_strided_slice %238 {offsets = [0, 0, 0], sizes = [2, 8, 16], strides = [1, 1, 1]} : vector<2x8x32xf32> to vector<2x8x16xf32>
    %244 = arith.truncf %243 : vector<2x8x16xf32> to vector<2x8x16xbf16>
    %245 = vector.extract_strided_slice %239 {offsets = [0, 0, 0], sizes = [2, 8, 16], strides = [1, 1, 1]} : vector<2x8x32xf32> to vector<2x8x16xf32>
    %246 = arith.truncf %245 : vector<2x8x16xf32> to vector<2x8x16xbf16>
    "tpu.trace_start"() <{level = 10 : i32, message = "bqd,bkd->bqk"}> : () -> ()
    %cst_63 = arith.constant dense<0.000000e+00> : vector<2x8x8xf32>
    %247 = tpu.matmul %242, %244, %cst_63 {dimension_numbers = #tpu.dot_dimension_numbers<[2], [2], [1], [1], [0, 0, 0, 1, 1, 1], [0], [0]>} : vector<2x8x16xbf16>, vector<2x8x16xbf16>, vector<2x8x8xf32> -> vector<2x8x8xf32>
    "tpu.trace_stop"() : () -> ()
    %cst_64 = arith.constant 2.500000e-01 : f32
    %248 = vector.broadcast %cst_64 : f32 to vector<2x8x8xf32>
    %249 = arith.mulf %247, %248 : vector<2x8x8xf32>
    %cst_65 = arith.constant -1.000000e+30 : f32
    %250 = vector.shape_cast %25 : vector<8x8xi1> to vector<1x8x8xi1>
    %251 = vector.broadcast %250 : vector<1x8x8xi1> to vector<2x8x8xi1>
    %252 = vector.broadcast %cst_65 : f32 to vector<2x8x8xf32>
    %253 = arith.select %251, %249, %252 : vector<2x8x8xi1>, vector<2x8x8xf32>
    %cst_66 = arith.constant dense<0xFF800000> : vector<2x8xf32>
    %254 = vector.multi_reduction <maximumf>, %253, %cst_66 [2] : vector<2x8x8xf32> to vector<2x8xf32>
    %255 = vector.shape_cast %254 : vector<2x8xf32> to vector<2x8x1xf32>
    %256 = vector.broadcast %255 : vector<2x8x1xf32> to vector<2x8x8xf32>
    %257 = arith.subf %253, %256 : vector<2x8x8xf32>
    %258 = math.exp %257 : vector<2x8x8xf32>
    %cst_67 = arith.constant dense<0.000000e+00> : vector<2x8xf32>
    %259 = vector.multi_reduction <add>, %258, %cst_67 [2] : vector<2x8x8xf32> to vector<2x8xf32>
    %260 = vector.shape_cast %259 : vector<2x8xf32> to vector<2x8x1xf32>
    %261 = tpu.reciprocal %260 {approx = true} : vector<2x8x1xf32> -> vector<2x8x1xf32>
    %262 = vector.broadcast %261 : vector<2x8x1xf32> to vector<2x8x8xf32>
    %263 = arith.mulf %258, %262 : vector<2x8x8xf32>
    %264 = arith.truncf %263 : vector<2x8x8xf32> to vector<2x8x8xbf16>
    "tpu.trace_start"() <{level = 10 : i32, message = "bqk,bkd->bqd"}> : () -> ()
    %cst_68 = arith.constant dense<0.000000e+00> : vector<2x8x16xf32>
    %265 = tpu.matmul %264, %246, %cst_68 {dimension_numbers = #tpu.dot_dimension_numbers<[2], [1], [1], [2], [0, 0, 0, 1, 1, 2], [0], [0]>} : vector<2x8x8xbf16>, vector<2x8x16xbf16>, vector<2x8x16xf32> -> vector<2x8x16xf32>
    "tpu.trace_stop"() : () -> ()
    %266 = vector.extract_strided_slice %240 {offsets = [0, 0], sizes = [16, 32], strides = [1, 1]} : vector<32x32xf32> to vector<16x32xf32>
    %267 = vector.shape_cast %265 : vector<2x8x16xf32> to vector<16x16xf32>
    %268 = arith.truncf %267 : vector<16x16xf32> to vector<16x16xbf16>
    %269 = arith.truncf %266 : vector<16x32xf32> to vector<16x32xbf16>
    %cst_69 = arith.constant dense<0.000000e+00> : vector<16x32xf32>
    %270 = tpu.matmul %268, %269, %cst_69 {dimension_numbers = #tpu.dot_dimension_numbers<[1], [0], [0], [1], [0, 0, 1, 1], [], []>} : vector<16x16xbf16>, vector<16x32xbf16>, vector<16x32xf32> -> vector<16x32xf32>
    %271 = vector.shape_cast %270 : vector<16x32xf32> to vector<2x8x32xf32>
    %272 = vector.extract_strided_slice %228 {offsets = [0, 0, 16], sizes = [2, 8, 16], strides = [1, 1, 1]} : vector<2x8x32xf32> to vector<2x8x16xf32>
    %273 = arith.truncf %272 : vector<2x8x16xf32> to vector<2x8x16xbf16>
    %274 = vector.extract_strided_slice %238 {offsets = [0, 0, 16], sizes = [2, 8, 16], strides = [1, 1, 1]} : vector<2x8x32xf32> to vector<2x8x16xf32>
    %275 = arith.truncf %274 : vector<2x8x16xf32> to vector<2x8x16xbf16>
    %276 = vector.extract_strided_slice %239 {offsets = [0, 0, 16], sizes = [2, 8, 16], strides = [1, 1, 1]} : vector<2x8x32xf32> to vector<2x8x16xf32>
    %277 = arith.truncf %276 : vector<2x8x16xf32> to vector<2x8x16xbf16>
    "tpu.trace_start"() <{level = 10 : i32, message = "bqd,bkd->bqk"}> : () -> ()
    %cst_70 = arith.constant dense<0.000000e+00> : vector<2x8x8xf32>
    %278 = tpu.matmul %273, %275, %cst_70 {dimension_numbers = #tpu.dot_dimension_numbers<[2], [2], [1], [1], [0, 0, 0, 1, 1, 1], [0], [0]>} : vector<2x8x16xbf16>, vector<2x8x16xbf16>, vector<2x8x8xf32> -> vector<2x8x8xf32>
    "tpu.trace_stop"() : () -> ()
    %cst_71 = arith.constant 2.500000e-01 : f32
    %279 = vector.broadcast %cst_71 : f32 to vector<2x8x8xf32>
    %280 = arith.mulf %278, %279 : vector<2x8x8xf32>
    %cst_72 = arith.constant -1.000000e+30 : f32
    %281 = vector.shape_cast %25 : vector<8x8xi1> to vector<1x8x8xi1>
    %282 = vector.broadcast %281 : vector<1x8x8xi1> to vector<2x8x8xi1>
    %283 = vector.broadcast %cst_72 : f32 to vector<2x8x8xf32>
    %284 = arith.select %282, %280, %283 : vector<2x8x8xi1>, vector<2x8x8xf32>
    %cst_73 = arith.constant dense<0xFF800000> : vector<2x8xf32>
    %285 = vector.multi_reduction <maximumf>, %284, %cst_73 [2] : vector<2x8x8xf32> to vector<2x8xf32>
    %286 = vector.shape_cast %285 : vector<2x8xf32> to vector<2x8x1xf32>
    %287 = vector.broadcast %286 : vector<2x8x1xf32> to vector<2x8x8xf32>
    %288 = arith.subf %284, %287 : vector<2x8x8xf32>
    %289 = math.exp %288 : vector<2x8x8xf32>
    %cst_74 = arith.constant dense<0.000000e+00> : vector<2x8xf32>
    %290 = vector.multi_reduction <add>, %289, %cst_74 [2] : vector<2x8x8xf32> to vector<2x8xf32>
    %291 = vector.shape_cast %290 : vector<2x8xf32> to vector<2x8x1xf32>
    %292 = tpu.reciprocal %291 {approx = true} : vector<2x8x1xf32> -> vector<2x8x1xf32>
    %293 = vector.broadcast %292 : vector<2x8x1xf32> to vector<2x8x8xf32>
    %294 = arith.mulf %289, %293 : vector<2x8x8xf32>
    %295 = arith.truncf %294 : vector<2x8x8xf32> to vector<2x8x8xbf16>
    "tpu.trace_start"() <{level = 10 : i32, message = "bqk,bkd->bqd"}> : () -> ()
    %cst_75 = arith.constant dense<0.000000e+00> : vector<2x8x16xf32>
    %296 = tpu.matmul %295, %277, %cst_75 {dimension_numbers = #tpu.dot_dimension_numbers<[2], [1], [1], [2], [0, 0, 0, 1, 1, 2], [0], [0]>} : vector<2x8x8xbf16>, vector<2x8x16xbf16>, vector<2x8x16xf32> -> vector<2x8x16xf32>
    "tpu.trace_stop"() : () -> ()
    %297 = vector.extract_strided_slice %240 {offsets = [16, 0], sizes = [16, 32], strides = [1, 1]} : vector<32x32xf32> to vector<16x32xf32>
    %298 = vector.shape_cast %296 : vector<2x8x16xf32> to vector<16x16xf32>
    %299 = arith.truncf %298 : vector<16x16xf32> to vector<16x16xbf16>
    %300 = arith.truncf %297 : vector<16x32xf32> to vector<16x32xbf16>
    %cst_76 = arith.constant dense<0.000000e+00> : vector<16x32xf32>
    %301 = tpu.matmul %299, %300, %cst_76 {dimension_numbers = #tpu.dot_dimension_numbers<[1], [0], [0], [1], [0, 0, 1, 1], [], []>} : vector<16x16xbf16>, vector<16x32xbf16>, vector<16x32xf32> -> vector<16x32xf32>
    %302 = vector.shape_cast %301 : vector<16x32xf32> to vector<2x8x32xf32>
    %303 = arith.addf %271, %302 : vector<2x8x32xf32>
    %c344 = arith.constant 344 : index
    %c0_77 = arith.constant 0 : index
    %304 = vector.load %arg2[%c344, %c0_77] : memref<584x128xf32, #tpu.memory_space<vmem>>, vector<1x32xf32>
    %305 = vector.shape_cast %304 : vector<1x32xf32> to vector<1x1x32xf32>
    %306 = vector.broadcast %305 : vector<1x1x32xf32> to vector<2x8x32xf32>
    %307 = arith.addf %303, %306 : vector<2x8x32xf32>
    %308 = arith.addf %217, %307 : vector<2x8x32xf32>
    %c352 = arith.constant 352 : index
    %c0_78 = arith.constant 0 : index
    %309 = vector.load %arg2[%c352, %c0_78] : memref<584x128xf32, #tpu.memory_space<vmem>>, vector<1x32xf32>
    %c360 = arith.constant 360 : index
    %c0_79 = arith.constant 0 : index
    %310 = vector.load %arg2[%c360, %c0_79] : memref<584x128xf32, #tpu.memory_space<vmem>>, vector<1x32xf32>
    %cst_80 = arith.constant dense<0.000000e+00> : vector<2x8xf32>
    %311 = vector.multi_reduction <add>, %308, %cst_80 [2] : vector<2x8x32xf32> to vector<2x8xf32>
    %312 = vector.shape_cast %311 : vector<2x8xf32> to vector<2x8x1xf32>
    %cst_81 = arith.constant 3.200000e+01 : f32
    %313 = vector.broadcast %cst_81 : f32 to vector<2x8x1xf32>
    %314 = arith.divf %312, %313 : vector<2x8x1xf32>
    %315 = vector.broadcast %314 : vector<2x8x1xf32> to vector<2x8x32xf32>
    %316 = arith.subf %308, %315 : vector<2x8x32xf32>
    %317 = arith.mulf %316, %316 : vector<2x8x32xf32>
    %cst_82 = arith.constant dense<0.000000e+00> : vector<2x8xf32>
    %318 = vector.multi_reduction <add>, %317, %cst_82 [2] : vector<2x8x32xf32> to vector<2x8xf32>
    %319 = vector.shape_cast %318 : vector<2x8xf32> to vector<2x8x1xf32>
    %cst_83 = arith.constant 3.200000e+01 : f32
    %320 = vector.broadcast %cst_83 : f32 to vector<2x8x1xf32>
    %321 = arith.divf %319, %320 : vector<2x8x1xf32>
    %322 = vector.broadcast %314 : vector<2x8x1xf32> to vector<2x8x32xf32>
    %323 = arith.subf %308, %322 : vector<2x8x32xf32>
    %cst_84 = arith.constant 9.99999993E-9 : f32
    %324 = vector.broadcast %cst_84 : f32 to vector<2x8x1xf32>
    %325 = arith.addf %321, %324 : vector<2x8x1xf32>
    %326 = math.rsqrt %325 : vector<2x8x1xf32>
    %327 = vector.broadcast %326 : vector<2x8x1xf32> to vector<2x8x32xf32>
    %328 = arith.mulf %323, %327 : vector<2x8x32xf32>
    %329 = vector.shape_cast %309 : vector<1x32xf32> to vector<1x1x32xf32>
    %330 = vector.broadcast %329 : vector<1x1x32xf32> to vector<2x8x32xf32>
    %331 = arith.mulf %328, %330 : vector<2x8x32xf32>
    %332 = vector.shape_cast %310 : vector<1x32xf32> to vector<1x1x32xf32>
    %333 = vector.broadcast %332 : vector<1x1x32xf32> to vector<2x8x32xf32>
    %334 = arith.addf %331, %333 : vector<2x8x32xf32>
    %c368 = arith.constant 368 : index
    %c0_85 = arith.constant 0 : index
    %335 = vector.load %arg2[%c368, %c0_85] : memref<584x128xf32, #tpu.memory_space<vmem>>, vector<32x64xf32>
    %c400 = arith.constant 400 : index
    %c0_86 = arith.constant 0 : index
    %336 = vector.load %arg2[%c400, %c0_86] : memref<584x128xf32, #tpu.memory_space<vmem>>, vector<1x64xf32>
    %337 = vector.shape_cast %334 : vector<2x8x32xf32> to vector<16x32xf32>
    %338 = arith.truncf %337 : vector<16x32xf32> to vector<16x32xbf16>
    %339 = arith.truncf %335 : vector<32x64xf32> to vector<32x64xbf16>
    %cst_87 = arith.constant dense<0.000000e+00> : vector<16x64xf32>
    %340 = tpu.matmul %338, %339, %cst_87 {dimension_numbers = #tpu.dot_dimension_numbers<[1], [0], [0], [1], [0, 0, 1, 1], [], []>} : vector<16x32xbf16>, vector<32x64xbf16>, vector<16x64xf32> -> vector<16x64xf32>
    %341 = vector.broadcast %336 : vector<1x64xf32> to vector<16x64xf32>
    %342 = arith.addf %340, %341 : vector<16x64xf32>
    %343 = vector.shape_cast %342 : vector<16x64xf32> to vector<2x8x64xf32>
    %cst_88 = arith.constant 0.000000e+00 : f32
    %344 = vector.broadcast %cst_88 : f32 to vector<2x8x64xf32>
    %345 = arith.maximumf %343, %344 : vector<2x8x64xf32>
    %c408 = arith.constant 408 : index
    %c0_89 = arith.constant 0 : index
    %346 = vector.load %arg2[%c408, %c0_89] : memref<584x128xf32, #tpu.memory_space<vmem>>, vector<64x32xf32>
    %c472 = arith.constant 472 : index
    %c0_90 = arith.constant 0 : index
    %347 = vector.load %arg2[%c472, %c0_90] : memref<584x128xf32, #tpu.memory_space<vmem>>, vector<1x32xf32>
    %348 = vector.shape_cast %345 : vector<2x8x64xf32> to vector<16x64xf32>
    %349 = arith.truncf %348 : vector<16x64xf32> to vector<16x64xbf16>
    %350 = arith.truncf %346 : vector<64x32xf32> to vector<64x32xbf16>
    %cst_91 = arith.constant dense<0.000000e+00> : vector<16x32xf32>
    %351 = tpu.matmul %349, %350, %cst_91 {dimension_numbers = #tpu.dot_dimension_numbers<[1], [0], [0], [1], [0, 0, 1, 1], [], []>} : vector<16x64xbf16>, vector<64x32xbf16>, vector<16x32xf32> -> vector<16x32xf32>
    %352 = vector.broadcast %347 : vector<1x32xf32> to vector<16x32xf32>
    %353 = arith.addf %351, %352 : vector<16x32xf32>
    %354 = vector.shape_cast %353 : vector<16x32xf32> to vector<2x8x32xf32>
    %355 = arith.addf %334, %354 : vector<2x8x32xf32>
    %356 = vector.broadcast %7 : vector<2x8x1xf32> to vector<2x8x32xf32>
    %357 = arith.mulf %355, %356 : vector<2x8x32xf32>
    %c480 = arith.constant 480 : index
    %c0_92 = arith.constant 0 : index
    %358 = vector.load %arg2[%c480, %c0_92] : memref<584x128xf32, #tpu.memory_space<vmem>>, vector<1x32xf32>
    %c488 = arith.constant 488 : index
    %c0_93 = arith.constant 0 : index
    %359 = vector.load %arg2[%c488, %c0_93] : memref<584x128xf32, #tpu.memory_space<vmem>>, vector<1x32xf32>
    %cst_94 = arith.constant dense<0.000000e+00> : vector<2x8xf32>
    %360 = vector.multi_reduction <add>, %357, %cst_94 [2] : vector<2x8x32xf32> to vector<2x8xf32>
    %361 = vector.shape_cast %360 : vector<2x8xf32> to vector<2x8x1xf32>
    %cst_95 = arith.constant 3.200000e+01 : f32
    %362 = vector.broadcast %cst_95 : f32 to vector<2x8x1xf32>
    %363 = arith.divf %361, %362 : vector<2x8x1xf32>
    %364 = vector.broadcast %363 : vector<2x8x1xf32> to vector<2x8x32xf32>
    %365 = arith.subf %357, %364 : vector<2x8x32xf32>
    %366 = arith.mulf %365, %365 : vector<2x8x32xf32>
    %cst_96 = arith.constant dense<0.000000e+00> : vector<2x8xf32>
    %367 = vector.multi_reduction <add>, %366, %cst_96 [2] : vector<2x8x32xf32> to vector<2x8xf32>
    %368 = vector.shape_cast %367 : vector<2x8xf32> to vector<2x8x1xf32>
    %cst_97 = arith.constant 3.200000e+01 : f32
    %369 = vector.broadcast %cst_97 : f32 to vector<2x8x1xf32>
    %370 = arith.divf %368, %369 : vector<2x8x1xf32>
    %371 = vector.broadcast %363 : vector<2x8x1xf32> to vector<2x8x32xf32>
    %372 = arith.subf %357, %371 : vector<2x8x32xf32>
    %cst_98 = arith.constant 9.99999993E-9 : f32
    %373 = vector.broadcast %cst_98 : f32 to vector<2x8x1xf32>
    %374 = arith.addf %370, %373 : vector<2x8x1xf32>
    %375 = math.rsqrt %374 : vector<2x8x1xf32>
    %376 = vector.broadcast %375 : vector<2x8x1xf32> to vector<2x8x32xf32>
    %377 = arith.mulf %372, %376 : vector<2x8x32xf32>
    %378 = vector.shape_cast %358 : vector<1x32xf32> to vector<1x1x32xf32>
    %379 = vector.broadcast %378 : vector<1x1x32xf32> to vector<2x8x32xf32>
    %380 = arith.mulf %377, %379 : vector<2x8x32xf32>
    %381 = vector.shape_cast %359 : vector<1x32xf32> to vector<1x1x32xf32>
    %382 = vector.broadcast %381 : vector<1x1x32xf32> to vector<2x8x32xf32>
    %383 = arith.addf %380, %382 : vector<2x8x32xf32>
    %384 = vector.extract_strided_slice %383 {offsets = [0, 7, 0], sizes = [2, 1, 32], strides = [1, 1, 1]} : vector<2x8x32xf32> to vector<2x1x32xf32>
    %385 = vector.shape_cast %384 : vector<2x1x32xf32> to vector<2x32xf32>
    %c496 = arith.constant 496 : index
    %c0_99 = arith.constant 0 : index
    %386 = vector.load %arg2[%c496, %c0_99] : memref<584x128xf32, #tpu.memory_space<vmem>>, vector<4x32xf32>
    %c504 = arith.constant 504 : index
    %c0_100 = arith.constant 0 : index
    %387 = vector.load %arg2[%c504, %c0_100] : memref<584x128xf32, #tpu.memory_space<vmem>>, vector<1x32xf32>
    %388 = arith.truncf %1 : vector<2x4xf32> to vector<2x4xbf16>
    %389 = arith.truncf %386 : vector<4x32xf32> to vector<4x32xbf16>
    %cst_101 = arith.constant dense<0.000000e+00> : vector<2x32xf32>
    %390 = tpu.matmul %388, %389, %cst_101 {dimension_numbers = #tpu.dot_dimension_numbers<[1], [0], [0], [1], [0, 0, 1, 1], [], []>} : vector<2x4xbf16>, vector<4x32xbf16>, vector<2x32xf32> -> vector<2x32xf32>
    %391 = vector.broadcast %387 : vector<1x32xf32> to vector<2x32xf32>
    %392 = arith.addf %390, %391 : vector<2x32xf32>
    %cst_102 = arith.constant 0.000000e+00 : f32
    %393 = vector.broadcast %cst_102 : f32 to vector<2x32xf32>
    %394 = arith.maximumf %392, %393 : vector<2x32xf32>
    %395 = tpu.concatenate %385, %394 in 1 : vector<2x32xf32>, vector<2x32xf32> -> vector<2x64xf32>
    %c512 = arith.constant 512 : index
    %c0_103 = arith.constant 0 : index
    %396 = vector.load %arg2[%c512, %c0_103] : memref<584x128xf32, #tpu.memory_space<vmem>>, vector<64x64xf32>
    %c576 = arith.constant 576 : index
    %c0_104 = arith.constant 0 : index
    %397 = vector.load %arg2[%c576, %c0_104] : memref<584x128xf32, #tpu.memory_space<vmem>>, vector<1x64xf32>
    %398 = arith.truncf %395 : vector<2x64xf32> to vector<2x64xbf16>
    %399 = arith.truncf %396 : vector<64x64xf32> to vector<64x64xbf16>
    %cst_105 = arith.constant dense<0.000000e+00> : vector<2x64xf32>
    %400 = tpu.matmul %398, %399, %cst_105 {dimension_numbers = #tpu.dot_dimension_numbers<[1], [0], [0], [1], [0, 0, 1, 1], [], []>} : vector<2x64xbf16>, vector<64x64xbf16>, vector<2x64xf32> -> vector<2x64xf32>
    %401 = vector.broadcast %397 : vector<1x64xf32> to vector<2x64xf32>
    %402 = arith.addf %400, %401 : vector<2x64xf32>
    %cst_106 = arith.constant 0.000000e+00 : f32
    %403 = vector.broadcast %cst_106 : f32 to vector<2x64xf32>
    %404 = arith.maximumf %402, %403 : vector<2x64xf32>
    %c0_107 = arith.constant 0 : index
    %c0_108 = arith.constant 0 : index
    %405 = vector.load %arg3[%c0_107, %c0_108] : memref<2x64xf32, #tpu.memory_space<vmem>>, vector<2x64xf32>
    tpu.vector_store %arg3[%c0_107, %c0_108], %404 {strides = array<i32>} : memref<2x64xf32, #tpu.memory_space<vmem>>, vector<2x64xf32>,
    return
  }
}

</mosaic_0001>

<llo_original>
// kernel: tpu_custom_call.1
$region0: #{tpu_custom_call.1}
  #allocation0 [shape = 'u32[]', space=smem, size = 0x4, offset = 0x4, fixed_abs, tag = 'smem constant byte address 0x4 - core index']
  #allocation1 [shape = 'u32[144,128]{1,0:T(1,128)}', space=vmem, size = 0x12000, scoped, tag = 'internal scratch']
  %s0 = inlined_call_operand.hbm [shape: f32[2,8,16], index: 0, kind: input, shape index: {}]
  %s1 = inlined_call_operand.vmem [shape: f32[2,4], index: 1, kind: input, shape index: {}]
  %s2 = inlined_call_operand.hbm [shape: f32[584,128], index: 2, kind: input, shape index: {}]
  %s3 = inlined_call_operand.hbm [shape: f32[2,64], index: 3, kind: output, shape index: {}]
  %s4 = sld [smem:[#allocation0]]
  $region30: #{tpu_custom_call.1} parent=0
    _
  %s6 = ssub.s32 1, %s4
  %s7 = scalar_select 0, %s6, %s4
  $region1: #{tpu_custom_call.1} parent=0
    #allocation2 [shape = 'u8[8192]{0}', space=vmem, size = 0x2000, scoped, tag = 'input window, operand 0, single buffered']
    #allocation3 [shape = 's32[1]{0}', space=sflag, size = 0x4, scoped, tag = 'scoped memory for tpu_custom_call.1']
    #allocation4 [shape = 's32[1]{0}', space=sflag, size = 0x4, scoped, tag = 'scoped memory for tpu_custom_call.1']
    #allocation5 [shape = 'u8[299008]{0}', space=vmem, size = 0x49000, scoped, tag = 'input window, operand 2, single buffered']
    #allocation6 [shape = 's32[1]{0}', space=sflag, size = 0x4, scoped, tag = 'scoped memory for tpu_custom_call.1']
    #allocation7 [shape = 'u8[1024]{0}', space=vmem, size = 0x400, scoped, tag = 'output window, operand 0, single buffered']
    %8 = vsyncpa [#allocation3], 0
    %9 = vsyncpa [#allocation6], 0
    %10 = vsyncpa [#allocation4], 0
    // Predicated region
    $region2: #{tpu_custom_call.1} parent=1 // pred_check
      _
    $region3: #{tpu_custom_call.1} parent=1 // pred_check_branch
      %12 = sbr.rel (0) target = $region5
    $region4: #{tpu_custom_call.1} parent=1 // pred_region
      %s14 = ssub.s32 256, 256
      %15 = vsyncadd [#allocation3], %s14
      %s16 = sshll.u32 [#allocation2], 4
      %s17 = int_to_ptr.vmem [resolvable:$true] %s16
      %22 = dma.hbm_to_vmem [thread:$0]  %s0, 256, %s17, [#allocation3], 128, 128, 8
    $region5: #{tpu_custom_call.1} parent=1 // pred_fallthru
      _
    // Predicated region
    $region6: #{tpu_custom_call.1} parent=1 // pred_check
      _
    $region7: #{tpu_custom_call.1} parent=1 // pred_check_branch
      %24 = sbr.rel (0) target = $region9
    $region8: #{tpu_custom_call.1} parent=1 // pred_region
      _
    $region9: #{tpu_custom_call.1} parent=1 // pred_fallthru
      _
    // Predicated region
    $region10: #{tpu_custom_call.1} parent=1 // pred_check
      _
    $region11: #{tpu_custom_call.1} parent=1 // pred_check_branch
      %26 = sbr.rel (0) target = $region13
    $region12: #{tpu_custom_call.1} parent=1 // pred_region
      %s28 = ssub.s32 9344, 9344
      %29 = vsyncadd [#allocation6], %s28
      %s30 = sshll.u32 [#allocation5], 4
      %s31 = int_to_ptr.vmem [resolvable:$true] %s30
      %36 = dma.hbm_to_vmem [thread:$0]  %s2, 9344, %s31, [#allocation6], 128, 128, 8
    $region13: #{tpu_custom_call.1} parent=1 // pred_fallthru
      _
    // Predicated region
    $region14: #{tpu_custom_call.1} parent=1 // pred_check
      _
    $region15: #{tpu_custom_call.1} parent=1 // pred_check_branch
      %38 = sbr.rel (0) target = $region17
    $region16: #{tpu_custom_call.1} parent=1 // pred_region
      %39 = dma.done [#allocation3], 256
    $region17: #{tpu_custom_call.1} parent=1 // pred_fallthru
      _
    // Predicated region
    $region18: #{tpu_custom_call.1} parent=1 // pred_check
      _
    $region19: #{tpu_custom_call.1} parent=1 // pred_check_branch
      %41 = sbr.rel (0) target = $region21
    $region20: #{tpu_custom_call.1} parent=1 // pred_region
      %42 = dma.done [#allocation6], 9344
    $region21: #{tpu_custom_call.1} parent=1 // pred_fallthru
      _
    %v44 = vld [vmem:[#allocation2] sm:$0xff]
    %v45 = vld [vmem:[#allocation2 + $0x8] sm:$0xff]
    %v46 = vld [vmem:[%s1] sm:$0x3]
    %vm47 = vcmask 130048
    %v48 = vsel %vm47, %v44, 0.0
    %49 = vadd.xlane.f32.xlu0 %v48
    %v50 = vpop.xlane.xlu0 %49
    %v51 = vsel %vm47, %v45, 0.0
    %52 = vadd.xlane.f32.xlu0 %v51
    %v53 = vpop.xlane.xlu0 %52
    %vm54 = vcmp.ne.f32.partialorder %v50, 0.0
    %vm55 = vcmp.ne.f32.partialorder %v53, 0.0
    %v56 = vsel %vm54, 1, 0
    %v57 = vsel %vm55, 1, 0
    %v58 = vcvt.s32.f32 %v56
    %v59 = vcvt.s32.f32 %v57
    %v60 = vld [vmem:[#allocation5] sm:$0xff]
    %v61 = vld [vmem:[#allocation5 + $0x8] sm:$0xff]
    %v62 = vld [vmem:[#allocation5 + $0x10] sm:$0x1]
    %v63 = vpack.c.bf16 %v45, %v44
    %v64 = vpack.c.bf16 %v61, %v60
    %v65 = vlaneseq
    %v66 = vshrl.u32 %v65, 7
    %v67 = vsub.s32 0, %v66
    %v68 = vrot.slane %v62, %v67
    %v70 = vsel %vm47, %v63, 0
    %72 = vmatprep.subr.bf16.mxu0 0
    %73 = vmatpush1.bf16.msra.mxu0 %v64
    %74 = vmatprep.subr.bf16.mxu0 0
    %75 = vmatpush1.bf16.msra.mxu0 0
    %76 = vmatprep.subr.bf16.mxu0 0
    %77 = vmatpush1.bf16.msra.mxu0 0
    %78 = vmatprep.subr.bf16.mxu0 0
    %79 = vmatpush1.bf16.msra.mxu0 0
    %80 = vmatprep.subr.bf16.mxu0 0
    %81 = vmatpush1.bf16.msra.mxu0 0
    %82 = vmatprep.subr.bf16.mxu0 0
    %83 = vmatpush1.bf16.msra.mxu0 0
    %84 = vmatprep.subr.bf16.mxu0 0
    %85 = vmatpush1.bf16.msra.mxu0 0
    %86 = vmatprep.subr.bf16.mxu0 0
    %87 = vmatpush1.bf16.msra.mxu0 0
    %88 = vmatprep.subr.bf16.mxu0 0
    %89 = vmatpush1.bf16.msra.mxu0 0
    %90 = vmatprep.subr.bf16.mxu0 0
    %91 = vmatpush1.bf16.msra.mxu0 0
    %92 = vmatprep.subr.bf16.mxu0 0
    %93 = vmatpush1.bf16.msra.mxu0 0
    %94 = vmatprep.subr.bf16.mxu0 0
    %95 = vmatpush1.bf16.msra.mxu0 0
    %96 = vmatprep.subr.bf16.mxu0 0
    %97 = vmatpush1.bf16.msra.mxu0 0
    %98 = vmatprep.subr.bf16.mxu0 0
    %99 = vmatpush1.bf16.msra.mxu0 0
    %100 = vmatprep.subr.bf16.mxu0 0
    %101 = vmatpush1.bf16.msra.mxu0 0
    %102 = vmatprep.subr.bf16.mxu0 0
    %103 = vmatpush1.bf16.msra.mxu0 0
    %104 = vmatprep.mubr.bf16.mxu0 0
    %105 = vmatmul.mubr.bf16.gmra.mrb[0].mxu0 %v70
    %v106 = vpop.f32.mrb[0].mxu0
    %v107 = vadd.f32 %v68, %v106
    %v108 = vpop.f32.mrb[0].mxu0
    %v109 = vpop.f32.mrb[0].mxu0
    %v110 = vadd.f32 %v68, %v109
    %v111 = vpop.f32.mrb[0].mxu0
    %112 = vdwg.mxu0
    %v113 = vld [vmem:[#allocation5 + $0x18] sm:$0xff]
    %v114 = vadd.f32 %v107, %v113
    %v115 = vadd.f32 %v110, %v113
    %v116 = vmul.f32 %v114, %v58
    %v117 = vmul.f32 %v115, %v59
    %v118 = vlaneseq
    %v119 = vshrl.u32 %v118, 7
    %v120 = vlaneseq
    %v121 = vand.u32 %v120, 127
    %vm122 = vcmp.le.s32.totalorder %v121, %v119
    %v123 = vld [vmem:[#allocation5 + $0x20] sm:$0x1]
    %v124 = vld [vmem:[#allocation5 + $0x28] sm:$0x1]
    %vm125 = vcmask 261120
    %v126 = vsel %vm125, %v116, 0.0
    %127 = vadd.xlane.f32.xlu0 %v126
    %v128 = vpop.xlane.xlu0 %127
    %v129 = vsel %vm125, %v117, 0.0
    %130 = vadd.xlane.f32.xlu0 %v129
    %v131 = vpop.xlane.xlu0 %130
    %v132 = vrcp.pop 32.0
    %v133 = vmul.f32 %v128, %v132
    %v134 = vmul.f32 %v131, %v132
    %v135 = vsub.f32 %v116, %v133
    %v136 = vsub.f32 %v117, %v134
    %v137 = vmul.f32 %v135, %v135
    %v138 = vmul.f32 %v136, %v136
    %v139 = vsel %vm125, %v137, 0.0
    %140 = vadd.xlane.f32.xlu0 %v139
    %v141 = vpop.xlane.xlu0 %140
    %v142 = vsel %vm125, %v138, 0.0
    %143 = vadd.xlane.f32.xlu0 %v142
    %v144 = vpop.xlane.xlu0 %143
    %v145 = vmul.f32 %v141, %v132
    %v146 = vmul.f32 %v144, %v132
    %v147 = vadd.f32 %v145, 1e-08
    %v148 = vadd.f32 %v146, 1e-08
    %v149 = vrsqrt.pop %v147
    %v150 = vrsqrt.pop %v148
    %v151 = vmul.f32 %v135, %v149
    %v152 = vmul.f32 %v136, %v150
    %v153 = vlaneseq
    %v154 = vshrl.u32 %v153, 7
    %v155 = vsub.s32 0, %v154
    %v156 = vrot.slane %v123, %v155
    %v157 = vmul.f32 %v151, %v156
    %v158 = vmul.f32 %v152, %v156
    %v159 = vlaneseq
    %v160 = vshrl.u32 %v159, 7
    %v161 = vsub.s32 0, %v160
    %v162 = vrot.slane %v124, %v161
    %v163 = vadd.f32 %v157, %v162
    %v164 = vadd.f32 %v158, %v162
    %v165 = vld [vmem:[#allocation5 + $0x30] sm:$0xff]
    %v166 = vld [vmem:[#allocation5 + $0x38] sm:$0xff]
    %v167 = vld [vmem:[#allocation5 + $0x40] sm:$0xff]
    %v168 = vld [vmem:[#allocation5 + $0x48] sm:$0xff]
    %v169 = vld [vmem:[#allocation5 + $0x50] sm:$0x1]
    %v170 = vpack.c.bf16 %v164, %v163
    %v171 = vpack.c.bf16 %v166, %v165
    %v172 = vpack.c.bf16 %v168, %v167
    %v173 = vlaneseq
    %v174 = vshrl.u32 %v173, 7
    %v175 = vsub.s32 0, %v174
    %v176 = vrot.slane %v169, %v175
    %v178 = vsel %vm125, %v170, 0
    %180 = vmatprep.subr.bf16.mxu0 0
    %181 = vmatpush1.bf16.msra.mxu0 %v171
    %182 = vmatprep.subr.bf16.mxu0 0
    %183 = vmatpush1.bf16.msra.mxu0 %v172
    %184 = vmatprep.subr.bf16.mxu0 0
    %185 = vmatpush1.bf16.msra.mxu0 0
    %186 = vmatprep.subr.bf16.mxu0 0
    %187 = vmatpush1.bf16.msra.mxu0 0
    %188 = vmatprep.subr.bf16.mxu0 0
    %189 = vmatpush1.bf16.msra.mxu0 0
    %190 = vmatprep.subr.bf16.mxu0 0
    %191 = vmatpush1.bf16.msra.mxu0 0
    %192 = vmatprep.subr.bf16.mxu0 0
    %193 = vmatpush1.bf16.msra.mxu0 0
    %194 = vmatprep.subr.bf16.mxu0 0
    %195 = vmatpush1.bf16.msra.mxu0 0
    %196 = vmatprep.subr.bf16.mxu0 0
    %197 = vmatpush1.bf16.msra.mxu0 0
    %198 = vmatprep.subr.bf16.mxu0 0
    %199 = vmatpush1.bf16.msra.mxu0 0
    %200 = vmatprep.subr.bf16.mxu0 0
    %201 = vmatpush1.bf16.msra.mxu0 0
    %202 = vmatprep.subr.bf16.mxu0 0
    %203 = vmatpush1.bf16.msra.mxu0 0
    %204 = vmatprep.subr.bf16.mxu0 0
    %205 = vmatpush1.bf16.msra.mxu0 0
    %206 = vmatprep.subr.bf16.mxu0 0
    %207 = vmatpush1.bf16.msra.mxu0 0
    %208 = vmatprep.subr.bf16.mxu0 0
    %209 = vmatpush1.bf16.msra.mxu0 0
    %210 = vmatprep.subr.bf16.mxu0 0
    %211 = vmatpush1.bf16.msra.mxu0 0
    %212 = vmatprep.mubr.bf16.mxu0 0
    %213 = vmatmul.mubr.bf16.gmra.mrb[0].mxu0 %v178
    %v214 = vpop.f32.mrb[0].mxu0
    %v215 = vadd.f32 %v176, %v214
    %v216 = vpop.f32.mrb[0].mxu0
    %v217 = vpop.f32.mrb[0].mxu0
    %v218 = vadd.f32 %v176, %v217
    %v219 = vpop.f32.mrb[0].mxu0
    %220 = vdwg.mxu0
    %v221 = vpack.c.bf16 %v117, %v116
    %224 = vrot.lane.b32.xlu0 %v171, 96
    %v225 = vpop.permute.xlu0 %224
    %226 = vrot.lane.b32.xlu0 %v172, 96
    %v227 = vpop.permute.xlu0 %226
    %231 = vrot.lane.b32.xlu0 %v176, 96
    %v232 = vpop.permute.xlu0 %231
    %v235 = vsel %vm125, %v221, 0
    %237 = vmatprep.subr.bf16.mxu0 0
    %238 = vmatpush1.bf16.msra.mxu0 %v225
    %239 = vmatprep.subr.bf16.mxu0 0
    %240 = vmatpush1.bf16.msra.mxu0 %v227
    %241 = vmatprep.subr.bf16.mxu0 0
    %242 = vmatpush1.bf16.msra.mxu0 0
    %243 = vmatprep.subr.bf16.mxu0 0
    %244 = vmatpush1.bf16.msra.mxu0 0
    %245 = vmatprep.subr.bf16.mxu0 0
    %246 = vmatpush1.bf16.msra.mxu0 0
    %247 = vmatprep.subr.bf16.mxu0 0
    %248 = vmatpush1.bf16.msra.mxu0 0
    %249 = vmatprep.subr.bf16.mxu0 0
    %250 = vmatpush1.bf16.msra.mxu0 0
    %251 = vmatprep.subr.bf16.mxu0 0
    %252 = vmatpush1.bf16.msra.mxu0 0
    %253 = vmatprep.subr.bf16.mxu0 0
    %254 = vmatpush1.bf16.msra.mxu0 0
    %255 = vmatprep.subr.bf16.mxu0 0
    %256 = vmatpush1.bf16.msra.mxu0 0
    %257 = vmatprep.subr.bf16.mxu0 0
    %258 = vmatpush1.bf16.msra.mxu0 0
    %259 = vmatprep.subr.bf16.mxu0 0
    %260 = vmatpush1.bf16.msra.mxu0 0
    %261 = vmatprep.subr.bf16.mxu0 0
    %262 = vmatpush1.bf16.msra.mxu0 0
    %263 = vmatprep.subr.bf16.mxu0 0
    %264 = vmatpush1.bf16.msra.mxu0 0
    %265 = vmatprep.subr.bf16.mxu0 0
    %266 = vmatpush1.bf16.msra.mxu0 0
    %267 = vmatprep.subr.bf16.mxu0 0
    %268 = vmatpush1.bf16.msra.mxu0 0
    %269 = vmatprep.mubr.bf16.mxu0 0
    %270 = vmatmul.mubr.bf16.gmra.mrb[0].mxu0 %v235
    %v271 = vpop.f32.mrb[0].mxu0
    %v272 = vadd.f32 %v232, %v271
    %v273 = vpop.f32.mrb[0].mxu0
    %v274 = vpop.f32.mrb[0].mxu0
    %v275 = vadd.f32 %v232, %v274
    %v276 = vpop.f32.mrb[0].mxu0
    %277 = vdwg.mxu0
    %v278 = vld [vmem:[#allocation5 + $0x58] sm:$0xff]
    %v279 = vld [vmem:[#allocation5 + $0x60] sm:$0xff]
    %v280 = vld [vmem:[#allocation5 + $0x68] sm:$0xff]
    %v281 = vld [vmem:[#allocation5 + $0x70] sm:$0xff]
    %v282 = vpack.c.bf16 %v215, %v215
    %v283 = vpack.c.bf16 %v218, %v218
    %v284 = vpack.c.bf16 %v272, %v272
    %v285 = vpack.c.bf16 %v275, %v275
    %v287 = vsel %vm47, %v282, 0
    %v290 = vsel %vm47, %v284, 0
    %292 = vmatprep.subr.bf16.mxu0 0
    %293 = vmatpush1.bf16.xpose.msra.mxu0 %v290
    %294 = vmatprep.subr.bf16.mxu0 0
    %295 = vmatpush1.bf16.xpose.msra.mxu0 0
    %296 = vmatprep.subr.bf16.mxu0 0
    %297 = vmatpush1.bf16.xpose.msra.mxu0 0
    %298 = vmatprep.subr.bf16.mxu0 0
    %299 = vmatpush1.bf16.xpose.msra.mxu0 0
    %300 = vmatprep.subr.bf16.mxu0 0
    %301 = vmatpush1.bf16.xpose.msra.mxu0 0
    %302 = vmatprep.subr.bf16.mxu0 0
    %303 = vmatpush1.bf16.xpose.msra.mxu0 0
    %304 = vmatprep.subr.bf16.mxu0 0
    %305 = vmatpush1.bf16.xpose.msra.mxu0 0
    %306 = vmatprep.subr.bf16.mxu0 0
    %307 = vmatpush1.bf16.xpose.msra.mxu0 0
    %308 = vmatprep.subr.bf16.mxu0 0
    %309 = vmatpush1.bf16.xpose.msra.mxu0 0
    %310 = vmatprep.subr.bf16.mxu0 0
    %311 = vmatpush1.bf16.xpose.msra.mxu0 0
    %312 = vmatprep.subr.bf16.mxu0 0
    %313 = vmatpush1.bf16.xpose.msra.mxu0 0
    %314 = vmatprep.subr.bf16.mxu0 0
    %315 = vmatpush1.bf16.xpose.msra.mxu0 0
    %316 = vmatprep.subr.bf16.mxu0 0
    %317 = vmatpush1.bf16.xpose.msra.mxu0 0
    %318 = vmatprep.subr.bf16.mxu0 0
    %319 = vmatpush1.bf16.xpose.msra.mxu0 0
    %320 = vmatprep.subr.bf16.mxu0 0
    %321 = vmatpush1.bf16.xpose.msra.mxu0 0
    %322 = vmatprep.subr.bf16.mxu0 0
    %323 = vmatpush1.bf16.xpose.msra.mxu0 0
    %324 = vmatprep.mubr.bf16.mxu0 0
    %325 = vmatmul.mubr.bf16.gmra.mrb[0].mxu0 %v287
    %v326 = vpop.f32.mrb[0].mxu0
    %v327 = vadd.f32 0.0, %v326
    %v328 = vpop.f32.mrb[0].mxu0
    %v329 = vpop.f32.mrb[0].mxu0
    %v330 = vpop.f32.mrb[0].mxu0
    %331 = vdwg.mxu0
    %v333 = vsel %vm47, %v283, 0
    %v336 = vsel %vm47, %v285, 0
    %338 = vmatprep.subr.bf16.mxu0 0
    %339 = vmatpush1.bf16.xpose.msra.mxu0 %v336
    %340 = vmatprep.subr.bf16.mxu0 0
    %341 = vmatpush1.bf16.xpose.msra.mxu0 0
    %342 = vmatprep.subr.bf16.mxu0 0
    %343 = vmatpush1.bf16.xpose.msra.mxu0 0
    %344 = vmatprep.subr.bf16.mxu0 0
    %345 = vmatpush1.bf16.xpose.msra.mxu0 0
    %346 = vmatprep.subr.bf16.mxu0 0
    %347 = vmatpush1.bf16.xpose.msra.mxu0 0
    %348 = vmatprep.subr.bf16.mxu0 0
    %349 = vmatpush1.bf16.xpose.msra.mxu0 0
    %350 = vmatprep.subr.bf16.mxu0 0
    %351 = vmatpush1.bf16.xpose.msra.mxu0 0
    %352 = vmatprep.subr.bf16.mxu0 0
    %353 = vmatpush1.bf16.xpose.msra.mxu0 0
    %354 = vmatprep.subr.bf16.mxu0 0
    %355 = vmatpush1.bf16.xpose.msra.mxu0 0
    %356 = vmatprep.subr.bf16.mxu0 0
    %357 = vmatpush1.bf16.xpose.msra.mxu0 0
    %358 = vmatprep.subr.bf16.mxu0 0
    %359 = vmatpush1.bf16.xpose.msra.mxu0 0
    %360 = vmatprep.subr.bf16.mxu0 0
    %361 = vmatpush1.bf16.xpose.msra.mxu0 0
    %362 = vmatprep.subr.bf16.mxu0 0
    %363 = vmatpush1.bf16.xpose.msra.mxu0 0
    %364 = vmatprep.subr.bf16.mxu0 0
    %365 = vmatpush1.bf16.xpose.msra.mxu0 0
    %366 = vmatprep.subr.bf16.mxu0 0
    %367 = vmatpush1.bf16.xpose.msra.mxu0 0
    %368 = vmatprep.subr.bf16.mxu0 0
    %369 = vmatpush1.bf16.xpose.msra.mxu0 0
    %370 = vmatprep.mubr.bf16.mxu0 0
    %371 = vmatmul.mubr.bf16.gmra.mrb[0].mxu0 %v333
    %v372 = vpop.f32.mrb[0].mxu0
    %v373 = vadd.f32 0.0, %v372
    %v374 = vpop.f32.mrb[0].mxu0
    %v375 = vpop.f32.mrb[0].mxu0
    %v376 = vpop.f32.mrb[0].mxu0
    %377 = vdwg.mxu0
    %v378 = vmul.f32 %v327, 0.25
    %v379 = vmul.f32 %v373, 0.25
    %v380 = vsel %vm122, 1, 0
    %vm381 = vcmp.eq.s32.totalorder %v380, 1
    %v382 = vsel %vm381, %v378, -1e+30
    %v383 = vsel %vm381, %v379, -1e+30
    %vm384 = vcmask 64512
    %v385 = vsel %vm384, %v382, -inf
    %386 = vmax.xlane.f32.xlu0 %v385
    %v387 = vpop.xlane.xlu0 %386
    %v388 = vsel %vm384, %v383, -inf
    %389 = vmax.xlane.f32.xlu0 %v388
    %v390 = vpop.xlane.xlu0 %389
    %v391 = vsub.f32 %v382, %v387
    %v392 = vsub.f32 %v383, %v390
    %v393 = vmul.f32 %v391, 1.442695
    %v394 = vpow.pop %v393
    %v395 = vmul.f32 %v392, 1.442695
    %v396 = vpow.pop %v395
    %v397 = vsel %vm384, %v394, 0.0
    %398 = vadd.xlane.f32.xlu0 %v397
    %v399 = vpop.xlane.xlu0 %398
    %v400 = vsel %vm384, %v396, 0.0
    %401 = vadd.xlane.f32.xlu0 %v400
    %v402 = vpop.xlane.xlu0 %401
    %v403 = vrcp.pop %v399
    %v404 = vrcp.pop %v402
    %v405 = vmul.f32 %v394, %v403
    %v406 = vmul.f32 %v396, %v404
    %v407 = vpack.c.bf16 %v405, %v405
    %v408 = vpack.c.bf16 %v406, %v406
    %410 = vrot.lane.b32.xlu0 %v284, 96
    %v411 = vpop.permute.xlu0 %410
    %v413 = vsel %vm384, %v407, 0
    %vm415 = vcmask 1043456
    %v417 = vsel %vm415, %v411, 0
    %419 = vmatprep.subr.bf16.mxu0 0
    %420 = vmatpush1.bf16.msra.mxu0 %v417
    %421 = vmatprep.subr.bf16.mxu0 0
    %422 = vmatpush1.bf16.msra.mxu0 0
    %423 = vmatprep.subr.bf16.mxu0 0
    %424 = vmatpush1.bf16.msra.mxu0 0
    %425 = vmatprep.subr.bf16.mxu0 0
    %426 = vmatpush1.bf16.msra.mxu0 0
    %427 = vmatprep.subr.bf16.mxu0 0
    %428 = vmatpush1.bf16.msra.mxu0 0
    %429 = vmatprep.subr.bf16.mxu0 0
    %430 = vmatpush1.bf16.msra.mxu0 0
    %431 = vmatprep.subr.bf16.mxu0 0
    %432 = vmatpush1.bf16.msra.mxu0 0
    %433 = vmatprep.subr.bf16.mxu0 0
    %434 = vmatpush1.bf16.msra.mxu0 0
    %435 = vmatprep.subr.bf16.mxu0 0
    %436 = vmatpush1.bf16.msra.mxu0 0
    %437 = vmatprep.subr.bf16.mxu0 0
    %438 = vmatpush1.bf16.msra.mxu0 0
    %439 = vmatprep.subr.bf16.mxu0 0
    %440 = vmatpush1.bf16.msra.mxu0 0
    %441 = vmatprep.subr.bf16.mxu0 0
    %442 = vmatpush1.bf16.msra.mxu0 0
    %443 = vmatprep.subr.bf16.mxu0 0
    %444 = vmatpush1.bf16.msra.mxu0 0
    %445 = vmatprep.subr.bf16.mxu0 0
    %446 = vmatpush1.bf16.msra.mxu0 0
    %447 = vmatprep.subr.bf16.mxu0 0
    %448 = vmatpush1.bf16.msra.mxu0 0
    %449 = vmatprep.subr.bf16.mxu0 0
    %450 = vmatpush1.bf16.msra.mxu0 0
    %451 = vmatprep.mubr.bf16.mxu0 0
    %452 = vmatmul.mubr.bf16.gmra.mrb[0].mxu0 %v413
    %v453 = vpop.f32.mrb[0].mxu0
    %v454 = vadd.f32 0.0, %v453
    %v455 = vpop.f32.mrb[0].mxu0
    %v456 = vpop.f32.mrb[0].mxu0
    %v457 = vpop.f32.mrb[0].mxu0
    %458 = vdwg.mxu0
    %460 = vrot.lane.b32.xlu0 %v285, 96
    %v461 = vpop.permute.xlu0 %460
    %v463 = vsel %vm384, %v408, 0
    %v466 = vsel %vm415, %v461, 0
    %468 = vmatprep.subr.bf16.mxu0 0
    %469 = vmatpush1.bf16.msra.mxu0 %v466
    %470 = vmatprep.subr.bf16.mxu0 0
    %471 = vmatpush1.bf16.msra.mxu0 0
    %472 = vmatprep.subr.bf16.mxu0 0
    %473 = vmatpush1.bf16.msra.mxu0 0
    %474 = vmatprep.subr.bf16.mxu0 0
    %475 = vmatpush1.bf16.msra.mxu0 0
    %476 = vmatprep.subr.bf16.mxu0 0
    %477 = vmatpush1.bf16.msra.mxu0 0
    %478 = vmatprep.subr.bf16.mxu0 0
    %479 = vmatpush1.bf16.msra.mxu0 0
    %480 = vmatprep.subr.bf16.mxu0 0
    %481 = vmatpush1.bf16.msra.mxu0 0
    %482 = vmatprep.subr.bf16.mxu0 0
    %483 = vmatpush1.bf16.msra.mxu0 0
    %484 = vmatprep.subr.bf16.mxu0 0
    %485 = vmatpush1.bf16.msra.mxu0 0
    %486 = vmatprep.subr.bf16.mxu0 0
    %487 = vmatpush1.bf16.msra.mxu0 0
    %488 = vmatprep.subr.bf16.mxu0 0
    %489 = vmatpush1.bf16.msra.mxu0 0
    %490 = vmatprep.subr.bf16.mxu0 0
    %491 = vmatpush1.bf16.msra.mxu0 0
    %492 = vmatprep.subr.bf16.mxu0 0
    %493 = vmatpush1.bf16.msra.mxu0 0
    %494 = vmatprep.subr.bf16.mxu0 0
    %495 = vmatpush1.bf16.msra.mxu0 0
    %496 = vmatprep.subr.bf16.mxu0 0
    %497 = vmatpush1.bf16.msra.mxu0 0
    %498 = vmatprep.subr.bf16.mxu0 0
    %499 = vmatpush1.bf16.msra.mxu0 0
    %500 = vmatprep.mubr.bf16.mxu0 0
    %501 = vmatmul.mubr.bf16.gmra.mrb[0].mxu0 %v463
    %v502 = vpop.f32.mrb[0].mxu0
    %v503 = vadd.f32 0.0, %v502
    %v504 = vpop.f32.mrb[0].mxu0
    %v505 = vpop.f32.mrb[0].mxu0
    %v506 = vpop.f32.mrb[0].mxu0
    %507 = vdwg.mxu0
    %v508 = vpack.c.bf16 %v503, %v454
    %v509 = vpack.c.bf16 %v279, %v278
    %v511 = vsel %vm47, %v508, 0
    %513 = vmatprep.subr.bf16.mxu0 0
    %514 = vmatpush1.bf16.msra.mxu0 %v509
    %515 = vmatprep.subr.bf16.mxu0 0
    %516 = vmatpush1.bf16.msra.mxu0 0
    %517 = vmatprep.subr.bf16.mxu0 0
    %518 = vmatpush1.bf16.msra.mxu0 0
    %519 = vmatprep.subr.bf16.mxu0 0
    %520 = vmatpush1.bf16.msra.mxu0 0
    %521 = vmatprep.subr.bf16.mxu0 0
    %522 = vmatpush1.bf16.msra.mxu0 0
    %523 = vmatprep.subr.bf16.mxu0 0
    %524 = vmatpush1.bf16.msra.mxu0 0
    %525 = vmatprep.subr.bf16.mxu0 0
    %526 = vmatpush1.bf16.msra.mxu0 0
    %527 = vmatprep.subr.bf16.mxu0 0
    %528 = vmatpush1.bf16.msra.mxu0 0
    %529 = vmatprep.subr.bf16.mxu0 0
    %530 = vmatpush1.bf16.msra.mxu0 0
    %531 = vmatprep.subr.bf16.mxu0 0
    %532 = vmatpush1.bf16.msra.mxu0 0
    %533 = vmatprep.subr.bf16.mxu0 0
    %534 = vmatpush1.bf16.msra.mxu0 0
    %535 = vmatprep.subr.bf16.mxu0 0
    %536 = vmatpush1.bf16.msra.mxu0 0
    %537 = vmatprep.subr.bf16.mxu0 0
    %538 = vmatpush1.bf16.msra.mxu0 0
    %539 = vmatprep.subr.bf16.mxu0 0
    %540 = vmatpush1.bf16.msra.mxu0 0
    %541 = vmatprep.subr.bf16.mxu0 0
    %542 = vmatpush1.bf16.msra.mxu0 0
    %543 = vmatprep.subr.bf16.mxu0 0
    %544 = vmatpush1.bf16.msra.mxu0 0
    %545 = vmatprep.mubr.bf16.mxu0 0
    %546 = vmatmul.mubr.bf16.gmra.mrb[0].mxu0 %v511
    %v547 = vpop.f32.mrb[0].mxu0
    %v548 = vadd.f32 0.0, %v547
    %v549 = vpop.f32.mrb[0].mxu0
    %v550 = vpop.f32.mrb[0].mxu0
    %v551 = vadd.f32 0.0, %v550
    %v552 = vpop.f32.mrb[0].mxu0
    %553 = vdwg.mxu0
    %555 = vrot.lane.b32.xlu0 %v282, 112
    %v556 = vpop.permute.xlu0 %555
    %557 = vrot.lane.b32.xlu0 %v284, 112
    %v558 = vpop.permute.xlu0 %557
    %v560 = vsel %vm47, %v556, 0
    %v563 = vsel %vm47, %v558, 0
    %565 = vmatprep.subr.bf16.mxu0 0
    %566 = vmatpush1.bf16.xpose.msra.mxu0 %v563
    %567 = vmatprep.subr.bf16.mxu0 0
    %568 = vmatpush1.bf16.xpose.msra.mxu0 0
    %569 = vmatprep.subr.bf16.mxu0 0
    %570 = vmatpush1.bf16.xpose.msra.mxu0 0
    %571 = vmatprep.subr.bf16.mxu0 0
    %572 = vmatpush1.bf16.xpose.msra.mxu0 0
    %573 = vmatprep.subr.bf16.mxu0 0
    %574 = vmatpush1.bf16.xpose.msra.mxu0 0
    %575 = vmatprep.subr.bf16.mxu0 0
    %576 = vmatpush1.bf16.xpose.msra.mxu0 0
    %577 = vmatprep.subr.bf16.mxu0 0
    %578 = vmatpush1.bf16.xpose.msra.mxu0 0
    %579 = vmatprep.subr.bf16.mxu0 0
    %580 = vmatpush1.bf16.xpose.msra.mxu0 0
    %581 = vmatprep.subr.bf16.mxu0 0
    %582 = vmatpush1.bf16.xpose.msra.mxu0 0
    %583 = vmatprep.subr.bf16.mxu0 0
    %584 = vmatpush1.bf16.xpose.msra.mxu0 0
    %585 = vmatprep.subr.bf16.mxu0 0
    %586 = vmatpush1.bf16.xpose.msra.mxu0 0
    %587 = vmatprep.subr.bf16.mxu0 0
    %588 = vmatpush1.bf16.xpose.msra.mxu0 0
    %589 = vmatprep.subr.bf16.mxu0 0
    %590 = vmatpush1.bf16.xpose.msra.mxu0 0
    %591 = vmatprep.subr.bf16.mxu0 0
    %592 = vmatpush1.bf16.xpose.msra.mxu0 0
    %593 = vmatprep.subr.bf16.mxu0 0
    %594 = vmatpush1.bf16.xpose.msra.mxu0 0
    %595 = vmatprep.subr.bf16.mxu0 0
    %596 = vmatpush1.bf16.xpose.msra.mxu0 0
    %597 = vmatprep.mubr.bf16.mxu0 0
    %598 = vmatmul.mubr.bf16.gmra.mrb[0].mxu0 %v560
    %v599 = vpop.f32.mrb[0].mxu0
    %v600 = vadd.f32 0.0, %v599
    %v601 = vpop.f32.mrb[0].mxu0
    %v602 = vpop.f32.mrb[0].mxu0
    %v603 = vpop.f32.mrb[0].mxu0
    %604 = vdwg.mxu0
    %606 = vrot.lane.b32.xlu0 %v283, 112
    %v607 = vpop.permute.xlu0 %606
    %608 = vrot.lane.b32.xlu0 %v285, 112
    %v609 = vpop.permute.xlu0 %608
    %v611 = vsel %vm47, %v607, 0
    %v614 = vsel %vm47, %v609, 0
    %616 = vmatprep.subr.bf16.mxu0 0
    %617 = vmatpush1.bf16.xpose.msra.mxu0 %v614
    %618 = vmatprep.subr.bf16.mxu0 0
    %619 = vmatpush1.bf16.xpose.msra.mxu0 0
    %620 = vmatprep.subr.bf16.mxu0 0
    %621 = vmatpush1.bf16.xpose.msra.mxu0 0
    %622 = vmatprep.subr.bf16.mxu0 0
    %623 = vmatpush1.bf16.xpose.msra.mxu0 0
    %624 = vmatprep.subr.bf16.mxu0 0
    %625 = vmatpush1.bf16.xpose.msra.mxu0 0
    %626 = vmatprep.subr.bf16.mxu0 0
    %627 = vmatpush1.bf16.xpose.msra.mxu0 0
    %628 = vmatprep.subr.bf16.mxu0 0
    %629 = vmatpush1.bf16.xpose.msra.mxu0 0
    %630 = vmatprep.subr.bf16.mxu0 0
    %631 = vmatpush1.bf16.xpose.msra.mxu0 0
    %632 = vmatprep.subr.bf16.mxu0 0
    %633 = vmatpush1.bf16.xpose.msra.mxu0 0
    %634 = vmatprep.subr.bf16.mxu0 0
    %635 = vmatpush1.bf16.xpose.msra.mxu0 0
    %636 = vmatprep.subr.bf16.mxu0 0
    %637 = vmatpush1.bf16.xpose.msra.mxu0 0
    %638 = vmatprep.subr.bf16.mxu0 0
    %639 = vmatpush1.bf16.xpose.msra.mxu0 0
    %640 = vmatprep.subr.bf16.mxu0 0
    %641 = vmatpush1.bf16.xpose.msra.mxu0 0
    %642 = vmatprep.subr.bf16.mxu0 0
    %643 = vmatpush1.bf16.xpose.msra.mxu0 0
    %644 = vmatprep.subr.bf16.mxu0 0
    %645 = vmatpush1.bf16.xpose.msra.mxu0 0
    %646 = vmatprep.subr.bf16.mxu0 0
    %647 = vmatpush1.bf16.xpose.msra.mxu0 0
    %648 = vmatprep.mubr.bf16.mxu0 0
    %649 = vmatmul.mubr.bf16.gmra.mrb[0].mxu0 %v611
    %v650 = vpop.f32.mrb[0].mxu0
    %v651 = vadd.f32 0.0, %v650
    %v652 = vpop.f32.mrb[0].mxu0
    %v653 = vpop.f32.mrb[0].mxu0
    %v654 = vpop.f32.mrb[0].mxu0
    %655 = vdwg.mxu0
    %v656 = vmul.f32 %v600, 0.25
    %v657 = vmul.f32 %v651, 0.25
    %v658 = vsel %vm381, %v656, -1e+30
    %v659 = vsel %vm381, %v657, -1e+30
    %v660 = vsel %vm384, %v658, -inf
    %661 = vmax.xlane.f32.xlu0 %v660
    %v662 = vpop.xlane.xlu0 %661
    %v663 = vsel %vm384, %v659, -inf
    %664 = vmax.xlane.f32.xlu0 %v663
    %v665 = vpop.xlane.xlu0 %664
    %v666 = vsub.f32 %v658, %v662
    %v667 = vsub.f32 %v659, %v665
    %v668 = vmul.f32 %v666, 1.442695
    %v669 = vpow.pop %v668
    %v670 = vmul.f32 %v667, 1.442695
    %v671 = vpow.pop %v670
    %v672 = vsel %vm384, %v669, 0.0
    %673 = vadd.xlane.f32.xlu0 %v672
    %v674 = vpop.xlane.xlu0 %673
    %v675 = vsel %vm384, %v671, 0.0
    %676 = vadd.xlane.f32.xlu0 %v675
    %v677 = vpop.xlane.xlu0 %676
    %v678 = vrcp.pop %v674
    %v679 = vrcp.pop %v677
    %v680 = vmul.f32 %v669, %v678
    %v681 = vmul.f32 %v671, %v679
    %v682 = vpack.c.bf16 %v680, %v680
    %v683 = vpack.c.bf16 %v681, %v681
    %684 = vrot.lane.b32.xlu0 %v284, 80
    %v685 = vpop.permute.xlu0 %684
    %v687 = vsel %vm384, %v682, 0
    %v690 = vsel %vm415, %v685, 0
    %692 = vmatprep.subr.bf16.mxu0 0
    %693 = vmatpush1.bf16.msra.mxu0 %v690
    %694 = vmatprep.subr.bf16.mxu0 0
    %695 = vmatpush1.bf16.msra.mxu0 0
    %696 = vmatprep.subr.bf16.mxu0 0
    %697 = vmatpush1.bf16.msra.mxu0 0
    %698 = vmatprep.subr.bf16.mxu0 0
    %699 = vmatpush1.bf16.msra.mxu0 0
    %700 = vmatprep.subr.bf16.mxu0 0
    %701 = vmatpush1.bf16.msra.mxu0 0
    %702 = vmatprep.subr.bf16.mxu0 0
    %703 = vmatpush1.bf16.msra.mxu0 0
    %704 = vmatprep.subr.bf16.mxu0 0
    %705 = vmatpush1.bf16.msra.mxu0 0
    %706 = vmatprep.subr.bf16.mxu0 0
    %707 = vmatpush1.bf16.msra.mxu0 0
    %708 = vmatprep.subr.bf16.mxu0 0
    %709 = vmatpush1.bf16.msra.mxu0 0
    %710 = vmatprep.subr.bf16.mxu0 0
    %711 = vmatpush1.bf16.msra.mxu0 0
    %712 = vmatprep.subr.bf16.mxu0 0
    %713 = vmatpush1.bf16.msra.mxu0 0
    %714 = vmatprep.subr.bf16.mxu0 0
    %715 = vmatpush1.bf16.msra.mxu0 0
    %716 = vmatprep.subr.bf16.mxu0 0
    %717 = vmatpush1.bf16.msra.mxu0 0
    %718 = vmatprep.subr.bf16.mxu0 0
    %719 = vmatpush1.bf16.msra.mxu0 0
    %720 = vmatprep.subr.bf16.mxu0 0
    %721 = vmatpush1.bf16.msra.mxu0 0
    %722 = vmatprep.subr.bf16.mxu0 0
    %723 = vmatpush1.bf16.msra.mxu0 0
    %724 = vmatprep.mubr.bf16.mxu0 0
    %725 = vmatmul.mubr.bf16.gmra.mrb[0].mxu0 %v687
    %v726 = vpop.f32.mrb[0].mxu0
    %v727 = vadd.f32 0.0, %v726
    %v728 = vpop.f32.mrb[0].mxu0
    %v729 = vpop.f32.mrb[0].mxu0
    %v730 = vpop.f32.mrb[0].mxu0
    %731 = vdwg.mxu0
    %732 = vrot.lane.b32.xlu0 %v285, 80
    %v733 = vpop.permute.xlu0 %732
    %v735 = vsel %vm384, %v683, 0
    %v738 = vsel %vm415, %v733, 0
    %740 = vmatprep.subr.bf16.mxu0 0
    %741 = vmatpush1.bf16.msra.mxu0 %v738
    %742 = vmatprep.subr.bf16.mxu0 0
    %743 = vmatpush1.bf16.msra.mxu0 0
    %744 = vmatprep.subr.bf16.mxu0 0
    %745 = vmatpush1.bf16.msra.mxu0 0
    %746 = vmatprep.subr.bf16.mxu0 0
    %747 = vmatpush1.bf16.msra.mxu0 0
    %748 = vmatprep.subr.bf16.mxu0 0
    %749 = vmatpush1.bf16.msra.mxu0 0
    %750 = vmatprep.subr.bf16.mxu0 0
    %751 = vmatpush1.bf16.msra.mxu0 0
    %752 = vmatprep.subr.bf16.mxu0 0
    %753 = vmatpush1.bf16.msra.mxu0 0
    %754 = vmatprep.subr.bf16.mxu0 0
    %755 = vmatpush1.bf16.msra.mxu0 0
    %756 = vmatprep.subr.bf16.mxu0 0
    %757 = vmatpush1.bf16.msra.mxu0 0
    %758 = vmatprep.subr.bf16.mxu0 0
    %759 = vmatpush1.bf16.msra.mxu0 0
    %760 = vmatprep.subr.bf16.mxu0 0
    %761 = vmatpush1.bf16.msra.mxu0 0
    %762 = vmatprep.subr.bf16.mxu0 0
    %763 = vmatpush1.bf16.msra.mxu0 0
    %764 = vmatprep.subr.bf16.mxu0 0
    %765 = vmatpush1.bf16.msra.mxu0 0
    %766 = vmatprep.subr.bf16.mxu0 0
    %767 = vmatpush1.bf16.msra.mxu0 0
    %768 = vmatprep.subr.bf16.mxu0 0
    %769 = vmatpush1.bf16.msra.mxu0 0
    %770 = vmatprep.subr.bf16.mxu0 0
    %771 = vmatpush1.bf16.msra.mxu0 0
    %772 = vmatprep.mubr.bf16.mxu0 0
    %773 = vmatmul.mubr.bf16.gmra.mrb[0].mxu0 %v735
    %v774 = vpop.f32.mrb[0].mxu0
    %v775 = vadd.f32 0.0, %v774
    %v776 = vpop.f32.mrb[0].mxu0
    %v777 = vpop.f32.mrb[0].mxu0
    %v778 = vpop.f32.mrb[0].mxu0
    %779 = vdwg.mxu0
    %v780 = vpack.c.bf16 %v775, %v727
    %v781 = vpack.c.bf16 %v281, %v280
    %v783 = vsel %vm47, %v780, 0
    %785 = vmatprep.subr.bf16.mxu0 0
    %786 = vmatpush1.bf16.msra.mxu0 %v781
    %787 = vmatprep.subr.bf16.mxu0 0
    %788 = vmatpush1.bf16.msra.mxu0 0
    %789 = vmatprep.subr.bf16.mxu0 0
    %790 = vmatpush1.bf16.msra.mxu0 0
    %791 = vmatprep.subr.bf16.mxu0 0
    %792 = vmatpush1.bf16.msra.mxu0 0
    %793 = vmatprep.subr.bf16.mxu0 0
    %794 = vmatpush1.bf16.msra.mxu0 0
    %795 = vmatprep.subr.bf16.mxu0 0
    %796 = vmatpush1.bf16.msra.mxu0 0
    %797 = vmatprep.subr.bf16.mxu0 0
    %798 = vmatpush1.bf16.msra.mxu0 0
    %799 = vmatprep.subr.bf16.mxu0 0
    %800 = vmatpush1.bf16.msra.mxu0 0
    %801 = vmatprep.subr.bf16.mxu0 0
    %802 = vmatpush1.bf16.msra.mxu0 0
    %803 = vmatprep.subr.bf16.mxu0 0
    %804 = vmatpush1.bf16.msra.mxu0 0
    %805 = vmatprep.subr.bf16.mxu0 0
    %806 = vmatpush1.bf16.msra.mxu0 0
    %807 = vmatprep.subr.bf16.mxu0 0
    %808 = vmatpush1.bf16.msra.mxu0 0
    %809 = vmatprep.subr.bf16.mxu0 0
    %810 = vmatpush1.bf16.msra.mxu0 0
    %811 = vmatprep.subr.bf16.mxu0 0
    %812 = vmatpush1.bf16.msra.mxu0 0
    %813 = vmatprep.subr.bf16.mxu0 0
    %814 = vmatpush1.bf16.msra.mxu0 0
    %815 = vmatprep.subr.bf16.mxu0 0
    %816 = vmatpush1.bf16.msra.mxu0 0
    %817 = vmatprep.mubr.bf16.mxu0 0
    %818 = vmatmul.mubr.bf16.gmra.mrb[0].mxu0 %v783
    %v819 = vpop.f32.mrb[0].mxu0
    %v820 = vadd.f32 0.0, %v819
    %v821 = vpop.f32.mrb[0].mxu0
    %v822 = vpop.f32.mrb[0].mxu0
    %v823 = vadd.f32 0.0, %v822
    %v824 = vpop.f32.mrb[0].mxu0
    %825 = vdwg.mxu0
    %v826 = vadd.f32 %v548, %v820
    %v827 = vadd.f32 %v551, %v823
    %v828 = vld [vmem:[#allocation5 + $0x78] sm:$0x1]
    %v829 = vlaneseq
    %v830 = vshrl.u32 %v829, 7
    %v831 = vsub.s32 0, %v830
    %v832 = vrot.slane %v828, %v831
    %v833 = vadd.f32 %v826, %v832
    %v834 = vadd.f32 %v827, %v832
    %v835 = vadd.f32 %v163, %v833
    %v836 = vadd.f32 %v164, %v834
    %v837 = vld [vmem:[#allocation5 + $0x80] sm:$0x1]
    %v838 = vld [vmem:[#allocation5 + $0x88] sm:$0x1]
    %v839 = vsel %vm125, %v835, 0.0
    %840 = vadd.xlane.f32.xlu0 %v839
    %v841 = vpop.xlane.xlu0 %840
    %v842 = vsel %vm125, %v836, 0.0
    %843 = vadd.xlane.f32.xlu0 %v842
    %v844 = vpop.xlane.xlu0 %843
    %v845 = vmul.f32 %v841, %v132
    %v846 = vmul.f32 %v844, %v132
    %v847 = vsub.f32 %v835, %v845
    %v848 = vsub.f32 %v836, %v846
    %v849 = vmul.f32 %v847, %v847
    %v850 = vmul.f32 %v848, %v848
    %v851 = vsel %vm125, %v849, 0.0
    %852 = vadd.xlane.f32.xlu0 %v851
    %v853 = vpop.xlane.xlu0 %852
    %v854 = vsel %vm125, %v850, 0.0
    %855 = vadd.xlane.f32.xlu0 %v854
    %v856 = vpop.xlane.xlu0 %855
    %v857 = vmul.f32 %v853, %v132
    %v858 = vmul.f32 %v856, %v132
    %v859 = vadd.f32 %v857, 1e-08
    %v860 = vadd.f32 %v858, 1e-08
    %v861 = vrsqrt.pop %v859
    %v862 = vrsqrt.pop %v860
    %v863 = vmul.f32 %v847, %v861
    %v864 = vmul.f32 %v848, %v862
    %v865 = vlaneseq
    %v866 = vshrl.u32 %v865, 7
    %v867 = vsub.s32 0, %v866
    %v868 = vrot.slane %v837, %v867
    %v869 = vmul.f32 %v863, %v868
    %v870 = vmul.f32 %v864, %v868
    %v871 = vlaneseq
    %v872 = vshrl.u32 %v871, 7
    %v873 = vsub.s32 0, %v872
    %v874 = vrot.slane %v838, %v873
    %v875 = vadd.f32 %v869, %v874
    %v876 = vadd.f32 %v870, %v874
    %v877 = vld [vmem:[#allocation5 + $0x90] sm:$0xff]
    %v878 = vld [vmem:[#allocation5 + $0x98] sm:$0xff]
    %v879 = vld [vmem:[#allocation5 + $0xa0] sm:$0xff]
    %v880 = vld [vmem:[#allocation5 + $0xa8] sm:$0xff]
    %v881 = vld [vmem:[#allocation5 + $0xb0] sm:$0x1]
    %v882 = vpack.c.bf16 %v876, %v875
    %v883 = vpack.c.bf16 %v878, %v877
    %v884 = vpack.c.bf16 %v880, %v879
    %v885 = vlaneseq
    %v886 = vshrl.u32 %v885, 7
    %v887 = vsub.s32 0, %v886
    %v888 = vrot.slane %v881, %v887
    %v890 = vsel %vm125, %v882, 0
    %892 = vmatprep.subr.bf16.mxu0 0
    %893 = vmatpush1.bf16.msra.mxu0 %v883
    %894 = vmatprep.subr.bf16.mxu0 0
    %895 = vmatpush1.bf16.msra.mxu0 %v884
    %896 = vmatprep.subr.bf16.mxu0 0
    %897 = vmatpush1.bf16.msra.mxu0 0
    %898 = vmatprep.subr.bf16.mxu0 0
    %899 = vmatpush1.bf16.msra.mxu0 0
    %900 = vmatprep.subr.bf16.mxu0 0
    %901 = vmatpush1.bf16.msra.mxu0 0
    %902 = vmatprep.subr.bf16.mxu0 0
    %903 = vmatpush1.bf16.msra.mxu0 0
    %904 = vmatprep.subr.bf16.mxu0 0
    %905 = vmatpush1.bf16.msra.mxu0 0
    %906 = vmatprep.subr.bf16.mxu0 0
    %907 = vmatpush1.bf16.msra.mxu0 0
    %908 = vmatprep.subr.bf16.mxu0 0
    %909 = vmatpush1.bf16.msra.mxu0 0
    %910 = vmatprep.subr.bf16.mxu0 0
    %911 = vmatpush1.bf16.msra.mxu0 0
    %912 = vmatprep.subr.bf16.mxu0 0
    %913 = vmatpush1.bf16.msra.mxu0 0
    %914 = vmatprep.subr.bf16.mxu0 0
    %915 = vmatpush1.bf16.msra.mxu0 0
    %916 = vmatprep.subr.bf16.mxu0 0
    %917 = vmatpush1.bf16.msra.mxu0 0
    %918 = vmatprep.subr.bf16.mxu0 0
    %919 = vmatpush1.bf16.msra.mxu0 0
    %920 = vmatprep.subr.bf16.mxu0 0
    %921 = vmatpush1.bf16.msra.mxu0 0
    %922 = vmatprep.subr.bf16.mxu0 0
    %923 = vmatpush1.bf16.msra.mxu0 0
    %924 = vmatprep.mubr.bf16.mxu0 0
    %925 = vmatmul.mubr.bf16.gmra.mrb[0].mxu0 %v890
    %v926 = vpop.f32.mrb[0].mxu0
    %v927 = vadd.f32 %v888, %v926
    %v928 = vpop.f32.mrb[0].mxu0
    %v929 = vpop.f32.mrb[0].mxu0
    %v930 = vadd.f32 %v888, %v929
    %v931 = vpop.f32.mrb[0].mxu0
    %932 = vdwg.mxu0
    %v933 = vmax.f32 %v927, 0.0
    %v934 = vmax.f32 %v930, 0.0
    %v935 = vld [vmem:[#allocation5 + $0xb8] sm:$0xff]
    %v936 = vld [vmem:[#allocation5 + $0xc0] sm:$0xff]
    %v937 = vld [vmem:[#allocation5 + $0xc8] sm:$0xff]
    %v938 = vld [vmem:[#allocation5 + $0xd0] sm:$0xff]
    %v939 = vld [vmem:[#allocation5 + $0xd8] sm:$0xff]
    %v940 = vld [vmem:[#allocation5 + $0xe0] sm:$0xff]
    %v941 = vld [vmem:[#allocation5 + $0xe8] sm:$0xff]
    %v942 = vld [vmem:[#allocation5 + $0xf0] sm:$0xff]
    %v943 = vld [vmem:[#allocation5 + $0xf8] sm:$0x1]
    %v944 = vpack.c.bf16 %v934, %v933
    %v945 = vpack.c.bf16 %v936, %v935
    %v946 = vpack.c.bf16 %v938, %v937
    %v947 = vpack.c.bf16 %v940, %v939
    %v948 = vpack.c.bf16 %v942, %v941
    %v949 = vlaneseq
    %v950 = vshrl.u32 %v949, 7
    %v951 = vsub.s32 0, %v950
    %v952 = vrot.slane %v943, %v951
    %vm953 = vcmask 523264
    %v955 = vsel %vm953, %v944, 0
    %957 = vmatprep.subr.bf16.mxu0 0
    %958 = vmatpush1.bf16.msra.mxu0 %v945
    %959 = vmatprep.subr.bf16.mxu0 0
    %960 = vmatpush1.bf16.msra.mxu0 %v946
    %961 = vmatprep.subr.bf16.mxu0 0
    %962 = vmatpush1.bf16.msra.mxu0 %v947
    %963 = vmatprep.subr.bf16.mxu0 0
    %964 = vmatpush1.bf16.msra.mxu0 %v948
    %965 = vmatprep.subr.bf16.mxu0 0
    %966 = vmatpush1.bf16.msra.mxu0 0
    %967 = vmatprep.subr.bf16.mxu0 0
    %968 = vmatpush1.bf16.msra.mxu0 0
    %969 = vmatprep.subr.bf16.mxu0 0
    %970 = vmatpush1.bf16.msra.mxu0 0
    %971 = vmatprep.subr.bf16.mxu0 0
    %972 = vmatpush1.bf16.msra.mxu0 0
    %973 = vmatprep.subr.bf16.mxu0 0
    %974 = vmatpush1.bf16.msra.mxu0 0
    %975 = vmatprep.subr.bf16.mxu0 0
    %976 = vmatpush1.bf16.msra.mxu0 0
    %977 = vmatprep.subr.bf16.mxu0 0
    %978 = vmatpush1.bf16.msra.mxu0 0
    %979 = vmatprep.subr.bf16.mxu0 0
    %980 = vmatpush1.bf16.msra.mxu0 0
    %981 = vmatprep.subr.bf16.mxu0 0
    %982 = vmatpush1.bf16.msra.mxu0 0
    %983 = vmatprep.subr.bf16.mxu0 0
    %984 = vmatpush1.bf16.msra.mxu0 0
    %985 = vmatprep.subr.bf16.mxu0 0
    %986 = vmatpush1.bf16.msra.mxu0 0
    %987 = vmatprep.subr.bf16.mxu0 0
    %988 = vmatpush1.bf16.msra.mxu0 0
    %989 = vmatprep.mubr.bf16.mxu0 0
    %990 = vmatmul.mubr.bf16.gmra.mrb[0].mxu0 %v955
    %v991 = vpop.f32.mrb[0].mxu0
    %v992 = vadd.f32 %v952, %v991
    %v993 = vpop.f32.mrb[0].mxu0
    %v994 = vpop.f32.mrb[0].mxu0
    %v995 = vadd.f32 %v952, %v994
    %v996 = vpop.f32.mrb[0].mxu0
    %997 = vdwg.mxu0
    %v998 = vadd.f32 %v875, %v992
    %v999 = vadd.f32 %v876, %v995
    %v1000 = vmul.f32 %v998, %v58
    %v1001 = vmul.f32 %v999, %v59
    %v1002 = vld [vmem:[#allocation5 + $0x100] sm:$0x1]
    %v1003 = vld [vmem:[#allocation5 + $0x108] sm:$0x1]
    %v1004 = vsel %vm125, %v1000, 0.0
    %1005 = vadd.xlane.f32.xlu0 %v1004
    %v1006 = vpop.xlane.xlu0 %1005
    %v1007 = vsel %vm125, %v1001, 0.0
    %1008 = vadd.xlane.f32.xlu0 %v1007
    %v1009 = vpop.xlane.xlu0 %1008
    %v1010 = vmul.f32 %v1006, %v132
    %v1011 = vmul.f32 %v1009, %v132
    %v1012 = vsub.f32 %v1000, %v1010
    %v1013 = vsub.f32 %v1001, %v1011
    %v1014 = vmul.f32 %v1012, %v1012
    %v1015 = vmul.f32 %v1013, %v1013
    %v1016 = vsel %vm125, %v1014, 0.0
    %1017 = vadd.xlane.f32.xlu0 %v1016
    %v1018 = vpop.xlane.xlu0 %1017
    %v1019 = vsel %vm125, %v1015, 0.0
    %1020 = vadd.xlane.f32.xlu0 %v1019
    %v1021 = vpop.xlane.xlu0 %1020
    %v1022 = vmul.f32 %v1018, %v132
    %v1023 = vmul.f32 %v1021, %v132
    %v1024 = vadd.f32 %v1022, 1e-08
    %v1025 = vadd.f32 %v1023, 1e-08
    %v1026 = vrsqrt.pop %v1024
    %v1027 = vrsqrt.pop %v1025
    %v1028 = vmul.f32 %v1012, %v1026
    %v1029 = vmul.f32 %v1013, %v1027
    %v1030 = vlaneseq
    %v1031 = vshrl.u32 %v1030, 7
    %v1032 = vsub.s32 0, %v1031
    %v1033 = vrot.slane %v1002, %v1032
    %v1034 = vmul.f32 %v1028, %v1033
    %v1035 = vmul.f32 %v1029, %v1033
    %v1036 = vlaneseq
    %v1037 = vshrl.u32 %v1036, 7
    %v1038 = vsub.s32 0, %v1037
    %v1039 = vrot.slane %v1003, %v1038
    %v1040 = vadd.f32 %v1034, %v1039
    %v1041 = vadd.f32 %v1035, %v1039
    %v1042 = vld [vmem:[#allocation5 + $0x110] sm:$0xff]
    %v1043 = vld [vmem:[#allocation5 + $0x118] sm:$0xff]
    %v1044 = vld [vmem:[#allocation5 + $0x120] sm:$0xff]
    %v1045 = vld [vmem:[#allocation5 + $0x128] sm:$0xff]
    %v1046 = vld [vmem:[#allocation5 + $0x130] sm:$0x1]
    %v1047 = vpack.c.bf16 %v1041, %v1040
    %v1048 = vpack.c.bf16 %v1043, %v1042
    %v1049 = vpack.c.bf16 %v1045, %v1044
    %v1050 = vlaneseq
    %v1051 = vshrl.u32 %v1050, 7
    %v1052 = vsub.s32 0, %v1051
    %v1053 = vrot.slane %v1046, %v1052
    %v1055 = vsel %vm125, %v1047, 0
    %1057 = vmatprep.subr.bf16.mxu0 0
    %1058 = vmatpush1.bf16.msra.mxu0 %v1048
    %1059 = vmatprep.subr.bf16.mxu0 0
    %1060 = vmatpush1.bf16.msra.mxu0 %v1049
    %1061 = vmatprep.subr.bf16.mxu0 0
    %1062 = vmatpush1.bf16.msra.mxu0 0
    %1063 = vmatprep.subr.bf16.mxu0 0
    %1064 = vmatpush1.bf16.msra.mxu0 0
    %1065 = vmatprep.subr.bf16.mxu0 0
    %1066 = vmatpush1.bf16.msra.mxu0 0
    %1067 = vmatprep.subr.bf16.mxu0 0
    %1068 = vmatpush1.bf16.msra.mxu0 0
    %1069 = vmatprep.subr.bf16.mxu0 0
    %1070 = vmatpush1.bf16.msra.mxu0 0
    %1071 = vmatprep.subr.bf16.mxu0 0
    %1072 = vmatpush1.bf16.msra.mxu0 0
    %1073 = vmatprep.subr.bf16.mxu0 0
    %1074 = vmatpush1.bf16.msra.mxu0 0
    %1075 = vmatprep.subr.bf16.mxu0 0
    %1076 = vmatpush1.bf16.msra.mxu0 0
    %1077 = vmatprep.subr.bf16.mxu0 0
    %1078 = vmatpush1.bf16.msra.mxu0 0
    %1079 = vmatprep.subr.bf16.mxu0 0
    %1080 = vmatpush1.bf16.msra.mxu0 0
    %1081 = vmatprep.subr.bf16.mxu0 0
    %1082 = vmatpush1.bf16.msra.mxu0 0
    %1083 = vmatprep.subr.bf16.mxu0 0
    %1084 = vmatpush1.bf16.msra.mxu0 0
    %1085 = vmatprep.subr.bf16.mxu0 0
    %1086 = vmatpush1.bf16.msra.mxu0 0
    %1087 = vmatprep.subr.bf16.mxu0 0
    %1088 = vmatpush1.bf16.msra.mxu0 0
    %1089 = vmatprep.mubr.bf16.mxu0 0
    %1090 = vmatmul.mubr.bf16.gmra.mrb[0].mxu0 %v1055
    %v1091 = vpop.f32.mrb[0].mxu0
    %v1092 = vadd.f32 %v1053, %v1091
    %v1093 = vpop.f32.mrb[0].mxu0
    %v1094 = vpop.f32.mrb[0].mxu0
    %v1095 = vadd.f32 %v1053, %v1094
    %v1096 = vpop.f32.mrb[0].mxu0
    %1097 = vdwg.mxu0
    %v1098 = vpack.c.bf16 %v1001, %v1000
    %1101 = vrot.lane.b32.xlu0 %v1048, 96
    %v1102 = vpop.permute.xlu0 %1101
    %1103 = vrot.lane.b32.xlu0 %v1049, 96
    %v1104 = vpop.permute.xlu0 %1103
    %1108 = vrot.lane.b32.xlu0 %v1053, 96
    %v1109 = vpop.permute.xlu0 %1108
    %v1112 = vsel %vm125, %v1098, 0
    %1114 = vmatprep.subr.bf16.mxu0 0
    %1115 = vmatpush1.bf16.msra.mxu0 %v1102
    %1116 = vmatprep.subr.bf16.mxu0 0
    %1117 = vmatpush1.bf16.msra.mxu0 %v1104
    %1118 = vmatprep.subr.bf16.mxu0 0
    %1119 = vmatpush1.bf16.msra.mxu0 0
    %1120 = vmatprep.subr.bf16.mxu0 0
    %1121 = vmatpush1.bf16.msra.mxu0 0
    %1122 = vmatprep.subr.bf16.mxu0 0
    %1123 = vmatpush1.bf16.msra.mxu0 0
    %1124 = vmatprep.subr.bf16.mxu0 0
    %1125 = vmatpush1.bf16.msra.mxu0 0
    %1126 = vmatprep.subr.bf16.mxu0 0
    %1127 = vmatpush1.bf16.msra.mxu0 0
    %1128 = vmatprep.subr.bf16.mxu0 0
    %1129 = vmatpush1.bf16.msra.mxu0 0
    %1130 = vmatprep.subr.bf16.mxu0 0
    %1131 = vmatpush1.bf16.msra.mxu0 0
    %1132 = vmatprep.subr.bf16.mxu0 0
    %1133 = vmatpush1.bf16.msra.mxu0 0
    %1134 = vmatprep.subr.bf16.mxu0 0
    %1135 = vmatpush1.bf16.msra.mxu0 0
    %1136 = vmatprep.subr.bf16.mxu0 0
    %1137 = vmatpush1.bf16.msra.mxu0 0
    %1138 = vmatprep.subr.bf16.mxu0 0
    %1139 = vmatpush1.bf16.msra.mxu0 0
    %1140 = vmatprep.subr.bf16.mxu0 0
    %1141 = vmatpush1.bf16.msra.mxu0 0
    %1142 = vmatprep.subr.bf16.mxu0 0
    %1143 = vmatpush1.bf16.msra.mxu0 0
    %1144 = vmatprep.subr.bf16.mxu0 0
    %1145 = vmatpush1.bf16.msra.mxu0 0
    %1146 = vmatprep.mubr.bf16.mxu0 0
    %1147 = vmatmul.mubr.bf16.gmra.mrb[0].mxu0 %v1112
    %v1148 = vpop.f32.mrb[0].mxu0
    %v1149 = vadd.f32 %v1109, %v1148
    %v1150 = vpop.f32.mrb[0].mxu0
    %v1151 = vpop.f32.mrb[0].mxu0
    %v1152 = vadd.f32 %v1109, %v1151
    %v1153 = vpop.f32.mrb[0].mxu0
    %1154 = vdwg.mxu0
    %v1155 = vld [vmem:[#allocation5 + $0x138] sm:$0xff]
    %v1156 = vld [vmem:[#allocation5 + $0x140] sm:$0xff]
    %v1157 = vld [vmem:[#allocation5 + $0x148] sm:$0xff]
    %v1158 = vld [vmem:[#allocation5 + $0x150] sm:$0xff]
    %v1159 = vpack.c.bf16 %v1092, %v1092
    %v1160 = vpack.c.bf16 %v1095, %v1095
    %v1161 = vpack.c.bf16 %v1149, %v1149
    %v1162 = vpack.c.bf16 %v1152, %v1152
    %v1164 = vsel %vm47, %v1159, 0
    %v1167 = vsel %vm47, %v1161, 0
    %1169 = vmatprep.subr.bf16.mxu0 0
    %1170 = vmatpush1.bf16.xpose.msra.mxu0 %v1167
    %1171 = vmatprep.subr.bf16.mxu0 0
    %1172 = vmatpush1.bf16.xpose.msra.mxu0 0
    %1173 = vmatprep.subr.bf16.mxu0 0
    %1174 = vmatpush1.bf16.xpose.msra.mxu0 0
    %1175 = vmatprep.subr.bf16.mxu0 0
    %1176 = vmatpush1.bf16.xpose.msra.mxu0 0
    %1177 = vmatprep.subr.bf16.mxu0 0
    %1178 = vmatpush1.bf16.xpose.msra.mxu0 0
    %1179 = vmatprep.subr.bf16.mxu0 0
    %1180 = vmatpush1.bf16.xpose.msra.mxu0 0
    %1181 = vmatprep.subr.bf16.mxu0 0
    %1182 = vmatpush1.bf16.xpose.msra.mxu0 0
    %1183 = vmatprep.subr.bf16.mxu0 0
    %1184 = vmatpush1.bf16.xpose.msra.mxu0 0
    %1185 = vmatprep.subr.bf16.mxu0 0
    %1186 = vmatpush1.bf16.xpose.msra.mxu0 0
    %1187 = vmatprep.subr.bf16.mxu0 0
    %1188 = vmatpush1.bf16.xpose.msra.mxu0 0
    %1189 = vmatprep.subr.bf16.mxu0 0
    %1190 = vmatpush1.bf16.xpose.msra.mxu0 0
    %1191 = vmatprep.subr.bf16.mxu0 0
    %1192 = vmatpush1.bf16.xpose.msra.mxu0 0
    %1193 = vmatprep.subr.bf16.mxu0 0
    %1194 = vmatpush1.bf16.xpose.msra.mxu0 0
    %1195 = vmatprep.subr.bf16.mxu0 0
    %1196 = vmatpush1.bf16.xpose.msra.mxu0 0
    %1197 = vmatprep.subr.bf16.mxu0 0
    %1198 = vmatpush1.bf16.xpose.msra.mxu0 0
    %1199 = vmatprep.subr.bf16.mxu0 0
    %1200 = vmatpush1.bf16.xpose.msra.mxu0 0
    %1201 = vmatprep.mubr.bf16.mxu0 0
    %1202 = vmatmul.mubr.bf16.gmra.mrb[0].mxu0 %v1164
    %v1203 = vpop.f32.mrb[0].mxu0
    %v1204 = vadd.f32 0.0, %v1203
    %v1205 = vpop.f32.mrb[0].mxu0
    %v1206 = vpop.f32.mrb[0].mxu0
    %v1207 = vpop.f32.mrb[0].mxu0
    %1208 = vdwg.mxu0
    %v1210 = vsel %vm47, %v1160, 0
    %v1213 = vsel %vm47, %v1162, 0
    %1215 = vmatprep.subr.bf16.mxu0 0
    %1216 = vmatpush1.bf16.xpose.msra.mxu0 %v1213
    %1217 = vmatprep.subr.bf16.mxu0 0
    %1218 = vmatpush1.bf16.xpose.msra.mxu0 0
    %1219 = vmatprep.subr.bf16.mxu0 0
    %1220 = vmatpush1.bf16.xpose.msra.mxu0 0
    %1221 = vmatprep.subr.bf16.mxu0 0
    %1222 = vmatpush1.bf16.xpose.msra.mxu0 0
    %1223 = vmatprep.subr.bf16.mxu0 0
    %1224 = vmatpush1.bf16.xpose.msra.mxu0 0
    %1225 = vmatprep.subr.bf16.mxu0 0
    %1226 = vmatpush1.bf16.xpose.msra.mxu0 0
    %1227 = vmatprep.subr.bf16.mxu0 0
    %1228 = vmatpush1.bf16.xpose.msra.mxu0 0
    %1229 = vmatprep.subr.bf16.mxu0 0
    %1230 = vmatpush1.bf16.xpose.msra.mxu0 0
    %1231 = vmatprep.subr.bf16.mxu0 0
    %1232 = vmatpush1.bf16.xpose.msra.mxu0 0
    %1233 = vmatprep.subr.bf16.mxu0 0
    %1234 = vmatpush1.bf16.xpose.msra.mxu0 0
    %1235 = vmatprep.subr.bf16.mxu0 0
    %1236 = vmatpush1.bf16.xpose.msra.mxu0 0
    %1237 = vmatprep.subr.bf16.mxu0 0
    %1238 = vmatpush1.bf16.xpose.msra.mxu0 0
    %1239 = vmatprep.subr.bf16.mxu0 0
    %1240 = vmatpush1.bf16.xpose.msra.mxu0 0
    %1241 = vmatprep.subr.bf16.mxu0 0
    %1242 = vmatpush1.bf16.xpose.msra.mxu0 0
    %1243 = vmatprep.subr.bf16.mxu0 0
    %1244 = vmatpush1.bf16.xpose.msra.mxu0 0
    %1245 = vmatprep.subr.bf16.mxu0 0
    %1246 = vmatpush1.bf16.xpose.msra.mxu0 0
    %1247 = vmatprep.mubr.bf16.mxu0 0
    %1248 = vmatmul.mubr.bf16.gmra.mrb[0].mxu0 %v1210
    %v1249 = vpop.f32.mrb[0].mxu0
    %v1250 = vadd.f32 0.0, %v1249
    %v1251 = vpop.f32.mrb[0].mxu0
    %v1252 = vpop.f32.mrb[0].mxu0
    %v1253 = vpop.f32.mrb[0].mxu0
    %1254 = vdwg.mxu0
    %v1255 = vmul.f32 %v1204, 0.25
    %v1256 = vmul.f32 %v1250, 0.25
    %v1257 = vsel %vm381, %v1255, -1e+30
    %v1258 = vsel %vm381, %v1256, -1e+30
    %v1259 = vsel %vm384, %v1257, -inf
    %1260 = vmax.xlane.f32.xlu0 %v1259
    %v1261 = vpop.xlane.xlu0 %1260
    %v1262 = vsel %vm384, %v1258, -inf
    %1263 = vmax.xlane.f32.xlu0 %v1262
    %v1264 = vpop.xlane.xlu0 %1263
    %v1265 = vsub.f32 %v1257, %v1261
    %v1266 = vsub.f32 %v1258, %v1264
    %v1267 = vmul.f32 %v1265, 1.442695
    %v1268 = vpow.pop %v1267
    %v1269 = vmul.f32 %v1266, 1.442695
    %v1270 = vpow.pop %v1269
    %v1271 = vsel %vm384, %v1268, 0.0
    %1272 = vadd.xlane.f32.xlu0 %v1271
    %v1273 = vpop.xlane.xlu0 %1272
    %v1274 = vsel %vm384, %v1270, 0.0
    %1275 = vadd.xlane.f32.xlu0 %v1274
    %v1276 = vpop.xlane.xlu0 %1275
    %v1277 = vrcp.pop %v1273
    %v1278 = vrcp.pop %v1276
    %v1279 = vmul.f32 %v1268, %v1277
    %v1280 = vmul.f32 %v1270, %v1278
    %v1281 = vpack.c.bf16 %v1279, %v1279
    %v1282 = vpack.c.bf16 %v1280, %v1280
    %1284 = vrot.lane.b32.xlu0 %v1161, 96
    %v1285 = vpop.permute.xlu0 %1284
    %v1287 = vsel %vm384, %v1281, 0
    %v1290 = vsel %vm415, %v1285, 0
    %1292 = vmatprep.subr.bf16.mxu0 0
    %1293 = vmatpush1.bf16.msra.mxu0 %v1290
    %1294 = vmatprep.subr.bf16.mxu0 0
    %1295 = vmatpush1.bf16.msra.mxu0 0
    %1296 = vmatprep.subr.bf16.mxu0 0
    %1297 = vmatpush1.bf16.msra.mxu0 0
    %1298 = vmatprep.subr.bf16.mxu0 0
    %1299 = vmatpush1.bf16.msra.mxu0 0
    %1300 = vmatprep.subr.bf16.mxu0 0
    %1301 = vmatpush1.bf16.msra.mxu0 0
    %1302 = vmatprep.subr.bf16.mxu0 0
    %1303 = vmatpush1.bf16.msra.mxu0 0
    %1304 = vmatprep.subr.bf16.mxu0 0
    %1305 = vmatpush1.bf16.msra.mxu0 0
    %1306 = vmatprep.subr.bf16.mxu0 0
    %1307 = vmatpush1.bf16.msra.mxu0 0
    %1308 = vmatprep.subr.bf16.mxu0 0
    %1309 = vmatpush1.bf16.msra.mxu0 0
    %1310 = vmatprep.subr.bf16.mxu0 0
    %1311 = vmatpush1.bf16.msra.mxu0 0
    %1312 = vmatprep.subr.bf16.mxu0 0
    %1313 = vmatpush1.bf16.msra.mxu0 0
    %1314 = vmatprep.subr.bf16.mxu0 0
    %1315 = vmatpush1.bf16.msra.mxu0 0
    %1316 = vmatprep.subr.bf16.mxu0 0
    %1317 = vmatpush1.bf16.msra.mxu0 0
    %1318 = vmatprep.subr.bf16.mxu0 0
    %1319 = vmatpush1.bf16.msra.mxu0 0
    %1320 = vmatprep.subr.bf16.mxu0 0
    %1321 = vmatpush1.bf16.msra.mxu0 0
    %1322 = vmatprep.subr.bf16.mxu0 0
    %1323 = vmatpush1.bf16.msra.mxu0 0
    %1324 = vmatprep.mubr.bf16.mxu0 0
    %1325 = vmatmul.mubr.bf16.gmra.mrb[0].mxu0 %v1287
    %v1326 = vpop.f32.mrb[0].mxu0
    %v1327 = vadd.f32 0.0, %v1326
    %v1328 = vpop.f32.mrb[0].mxu0
    %v1329 = vpop.f32.mrb[0].mxu0
    %v1330 = vpop.f32.mrb[0].mxu0
    %1331 = vdwg.mxu0
    %1333 = vrot.lane.b32.xlu0 %v1162, 96
    %v1334 = vpop.permute.xlu0 %1333
    %v1336 = vsel %vm384, %v1282, 0
    %v1339 = vsel %vm415, %v1334, 0
    %1341 = vmatprep.subr.bf16.mxu0 0
    %1342 = vmatpush1.bf16.msra.mxu0 %v1339
    %1343 = vmatprep.subr.bf16.mxu0 0
    %1344 = vmatpush1.bf16.msra.mxu0 0
    %1345 = vmatprep.subr.bf16.mxu0 0
    %1346 = vmatpush1.bf16.msra.mxu0 0
    %1347 = vmatprep.subr.bf16.mxu0 0
    %1348 = vmatpush1.bf16.msra.mxu0 0
    %1349 = vmatprep.subr.bf16.mxu0 0
    %1350 = vmatpush1.bf16.msra.mxu0 0
    %1351 = vmatprep.subr.bf16.mxu0 0
    %1352 = vmatpush1.bf16.msra.mxu0 0
    %1353 = vmatprep.subr.bf16.mxu0 0
    %1354 = vmatpush1.bf16.msra.mxu0 0
    %1355 = vmatprep.subr.bf16.mxu0 0
    %1356 = vmatpush1.bf16.msra.mxu0 0
    %1357 = vmatprep.subr.bf16.mxu0 0
    %1358 = vmatpush1.bf16.msra.mxu0 0
    %1359 = vmatprep.subr.bf16.mxu0 0
    %1360 = vmatpush1.bf16.msra.mxu0 0
    %1361 = vmatprep.subr.bf16.mxu0 0
    %1362 = vmatpush1.bf16.msra.mxu0 0
    %1363 = vmatprep.subr.bf16.mxu0 0
    %1364 = vmatpush1.bf16.msra.mxu0 0
    %1365 = vmatprep.subr.bf16.mxu0 0
    %1366 = vmatpush1.bf16.msra.mxu0 0
    %1367 = vmatprep.subr.bf16.mxu0 0
    %1368 = vmatpush1.bf16.msra.mxu0 0
    %1369 = vmatprep.subr.bf16.mxu0 0
    %1370 = vmatpush1.bf16.msra.mxu0 0
    %1371 = vmatprep.subr.bf16.mxu0 0
    %1372 = vmatpush1.bf16.msra.mxu0 0
    %1373 = vmatprep.mubr.bf16.mxu0 0
    %1374 = vmatmul.mubr.bf16.gmra.mrb[0].mxu0 %v1336
    %v1375 = vpop.f32.mrb[0].mxu0
    %v1376 = vadd.f32 0.0, %v1375
    %v1377 = vpop.f32.mrb[0].mxu0
    %v1378 = vpop.f32.mrb[0].mxu0
    %v1379 = vpop.f32.mrb[0].mxu0
    %1380 = vdwg.mxu0
    %v1381 = vpack.c.bf16 %v1376, %v1327
    %v1382 = vpack.c.bf16 %v1156, %v1155
    %v1384 = vsel %vm47, %v1381, 0
    %1386 = vmatprep.subr.bf16.mxu0 0
    %1387 = vmatpush1.bf16.msra.mxu0 %v1382
    %1388 = vmatprep.subr.bf16.mxu0 0
    %1389 = vmatpush1.bf16.msra.mxu0 0
    %1390 = vmatprep.subr.bf16.mxu0 0
    %1391 = vmatpush1.bf16.msra.mxu0 0
    %1392 = vmatprep.subr.bf16.mxu0 0
    %1393 = vmatpush1.bf16.msra.mxu0 0
    %1394 = vmatprep.subr.bf16.mxu0 0
    %1395 = vmatpush1.bf16.msra.mxu0 0
    %1396 = vmatprep.subr.bf16.mxu0 0
    %1397 = vmatpush1.bf16.msra.mxu0 0
    %1398 = vmatprep.subr.bf16.mxu0 0
    %1399 = vmatpush1.bf16.msra.mxu0 0
    %1400 = vmatprep.subr.bf16.mxu0 0
    %1401 = vmatpush1.bf16.msra.mxu0 0
    %1402 = vmatprep.subr.bf16.mxu0 0
    %1403 = vmatpush1.bf16.msra.mxu0 0
    %1404 = vmatprep.subr.bf16.mxu0 0
    %1405 = vmatpush1.bf16.msra.mxu0 0
    %1406 = vmatprep.subr.bf16.mxu0 0
    %1407 = vmatpush1.bf16.msra.mxu0 0
    %1408 = vmatprep.subr.bf16.mxu0 0
    %1409 = vmatpush1.bf16.msra.mxu0 0
    %1410 = vmatprep.subr.bf16.mxu0 0
    %1411 = vmatpush1.bf16.msra.mxu0 0
    %1412 = vmatprep.subr.bf16.mxu0 0
    %1413 = vmatpush1.bf16.msra.mxu0 0
    %1414 = vmatprep.subr.bf16.mxu0 0
    %1415 = vmatpush1.bf16.msra.mxu0 0
    %1416 = vmatprep.subr.bf16.mxu0 0
    %1417 = vmatpush1.bf16.msra.mxu0 0
    %1418 = vmatprep.mubr.bf16.mxu0 0
    %1419 = vmatmul.mubr.bf16.gmra.mrb[0].mxu0 %v1384
    %v1420 = vpop.f32.mrb[0].mxu0
    %v1421 = vadd.f32 0.0, %v1420
    %v1422 = vpop.f32.mrb[0].mxu0
    %v1423 = vpop.f32.mrb[0].mxu0
    %v1424 = vadd.f32 0.0, %v1423
    %v1425 = vpop.f32.mrb[0].mxu0
    %1426 = vdwg.mxu0
    %1428 = vrot.lane.b32.xlu0 %v1159, 112
    %v1429 = vpop.permute.xlu0 %1428
    %1430 = vrot.lane.b32.xlu0 %v1161, 112
    %v1431 = vpop.permute.xlu0 %1430
    %v1433 = vsel %vm47, %v1429, 0
    %v1436 = vsel %vm47, %v1431, 0
    %1438 = vmatprep.subr.bf16.mxu0 0
    %1439 = vmatpush1.bf16.xpose.msra.mxu0 %v1436
    %1440 = vmatprep.subr.bf16.mxu0 0
    %1441 = vmatpush1.bf16.xpose.msra.mxu0 0
    %1442 = vmatprep.subr.bf16.mxu0 0
    %1443 = vmatpush1.bf16.xpose.msra.mxu0 0
    %1444 = vmatprep.subr.bf16.mxu0 0
    %1445 = vmatpush1.bf16.xpose.msra.mxu0 0
    %1446 = vmatprep.subr.bf16.mxu0 0
    %1447 = vmatpush1.bf16.xpose.msra.mxu0 0
    %1448 = vmatprep.subr.bf16.mxu0 0
    %1449 = vmatpush1.bf16.xpose.msra.mxu0 0
    %1450 = vmatprep.subr.bf16.mxu0 0
    %1451 = vmatpush1.bf16.xpose.msra.mxu0 0
    %1452 = vmatprep.subr.bf16.mxu0 0
    %1453 = vmatpush1.bf16.xpose.msra.mxu0 0
    %1454 = vmatprep.subr.bf16.mxu0 0
    %1455 = vmatpush1.bf16.xpose.msra.mxu0 0
    %1456 = vmatprep.subr.bf16.mxu0 0
    %1457 = vmatpush1.bf16.xpose.msra.mxu0 0
    %1458 = vmatprep.subr.bf16.mxu0 0
    %1459 = vmatpush1.bf16.xpose.msra.mxu0 0
    %1460 = vmatprep.subr.bf16.mxu0 0
    %1461 = vmatpush1.bf16.xpose.msra.mxu0 0
    %1462 = vmatprep.subr.bf16.mxu0 0
    %1463 = vmatpush1.bf16.xpose.msra.mxu0 0
    %1464 = vmatprep.subr.bf16.mxu0 0
    %1465 = vmatpush1.bf16.xpose.msra.mxu0 0
    %1466 = vmatprep.subr.bf16.mxu0 0
    %1467 = vmatpush1.bf16.xpose.msra.mxu0 0
    %1468 = vmatprep.subr.bf16.mxu0 0
    %1469 = vmatpush1.bf16.xpose.msra.mxu0 0
    %1470 = vmatprep.mubr.bf16.mxu0 0
    %1471 = vmatmul.mubr.bf16.gmra.mrb[0].mxu0 %v1433
    %v1472 = vpop.f32.mrb[0].mxu0
    %v1473 = vadd.f32 0.0, %v1472
    %v1474 = vpop.f32.mrb[0].mxu0
    %v1475 = vpop.f32.mrb[0].mxu0
    %v1476 = vpop.f32.mrb[0].mxu0
    %1477 = vdwg.mxu0
    %1479 = vrot.lane.b32.xlu0 %v1160, 112
    %v1480 = vpop.permute.xlu0 %1479
    %1481 = vrot.lane.b32.xlu0 %v1162, 112
    %v1482 = vpop.permute.xlu0 %1481
    %v1484 = vsel %vm47, %v1480, 0
    %v1487 = vsel %vm47, %v1482, 0
    %1489 = vmatprep.subr.bf16.mxu0 0
    %1490 = vmatpush1.bf16.xpose.msra.mxu0 %v1487
    %1491 = vmatprep.subr.bf16.mxu0 0
    %1492 = vmatpush1.bf16.xpose.msra.mxu0 0
    %1493 = vmatprep.subr.bf16.mxu0 0
    %1494 = vmatpush1.bf16.xpose.msra.mxu0 0
    %1495 = vmatprep.subr.bf16.mxu0 0
    %1496 = vmatpush1.bf16.xpose.msra.mxu0 0
    %1497 = vmatprep.subr.bf16.mxu0 0
    %1498 = vmatpush1.bf16.xpose.msra.mxu0 0
    %1499 = vmatprep.subr.bf16.mxu0 0
    %1500 = vmatpush1.bf16.xpose.msra.mxu0 0
    %1501 = vmatprep.subr.bf16.mxu0 0
    %1502 = vmatpush1.bf16.xpose.msra.mxu0 0
    %1503 = vmatprep.subr.bf16.mxu0 0
    %1504 = vmatpush1.bf16.xpose.msra.mxu0 0
    %1505 = vmatprep.subr.bf16.mxu0 0
    %1506 = vmatpush1.bf16.xpose.msra.mxu0 0
    %1507 = vmatprep.subr.bf16.mxu0 0
    %1508 = vmatpush1.bf16.xpose.msra.mxu0 0
    %1509 = vmatprep.subr.bf16.mxu0 0
    %1510 = vmatpush1.bf16.xpose.msra.mxu0 0
    %1511 = vmatprep.subr.bf16.mxu0 0
    %1512 = vmatpush1.bf16.xpose.msra.mxu0 0
    %1513 = vmatprep.subr.bf16.mxu0 0
    %1514 = vmatpush1.bf16.xpose.msra.mxu0 0
    %1515 = vmatprep.subr.bf16.mxu0 0
    %1516 = vmatpush1.bf16.xpose.msra.mxu0 0
    %1517 = vmatprep.subr.bf16.mxu0 0
    %1518 = vmatpush1.bf16.xpose.msra.mxu0 0
    %1519 = vmatprep.subr.bf16.mxu0 0
    %1520 = vmatpush1.bf16.xpose.msra.mxu0 0
    %1521 = vmatprep.mubr.bf16.mxu0 0
    %1522 = vmatmul.mubr.bf16.gmra.mrb[0].mxu0 %v1484
    %v1523 = vpop.f32.mrb[0].mxu0
    %v1524 = vadd.f32 0.0, %v1523
    %v1525 = vpop.f32.mrb[0].mxu0
    %v1526 = vpop.f32.mrb[0].mxu0
    %v1527 = vpop.f32.mrb[0].mxu0
    %1528 = vdwg.mxu0
    %v1529 = vmul.f32 %v1473, 0.25
    %v1530 = vmul.f32 %v1524, 0.25
    %v1531 = vsel %vm381, %v1529, -1e+30
    %v1532 = vsel %vm381, %v1530, -1e+30
    %v1533 = vsel %vm384, %v1531, -inf
    %1534 = vmax.xlane.f32.xlu0 %v1533
    %v1535 = vpop.xlane.xlu0 %1534
    %v1536 = vsel %vm384, %v1532, -inf
    %1537 = vmax.xlane.f32.xlu0 %v1536
    %v1538 = vpop.xlane.xlu0 %1537
    %v1539 = vsub.f32 %v1531, %v1535
    %v1540 = vsub.f32 %v1532, %v1538
    %v1541 = vmul.f32 %v1539, 1.442695
    %v1542 = vpow.pop %v1541
    %v1543 = vmul.f32 %v1540, 1.442695
    %v1544 = vpow.pop %v1543
    %v1545 = vsel %vm384, %v1542, 0.0
    %1546 = vadd.xlane.f32.xlu0 %v1545
    %v1547 = vpop.xlane.xlu0 %1546
    %v1548 = vsel %vm384, %v1544, 0.0
    %1549 = vadd.xlane.f32.xlu0 %v1548
    %v1550 = vpop.xlane.xlu0 %1549
    %v1551 = vrcp.pop %v1547
    %v1552 = vrcp.pop %v1550
    %v1553 = vmul.f32 %v1542, %v1551
    %v1554 = vmul.f32 %v1544, %v1552
    %v1555 = vpack.c.bf16 %v1553, %v1553
    %v1556 = vpack.c.bf16 %v1554, %v1554
    %1557 = vrot.lane.b32.xlu0 %v1161, 80
    %v1558 = vpop.permute.xlu0 %1557
    %v1560 = vsel %vm384, %v1555, 0
    %v1563 = vsel %vm415, %v1558, 0
    %1565 = vmatprep.subr.bf16.mxu0 0
    %1566 = vmatpush1.bf16.msra.mxu0 %v1563
    %1567 = vmatprep.subr.bf16.mxu0 0
    %1568 = vmatpush1.bf16.msra.mxu0 0
    %1569 = vmatprep.subr.bf16.mxu0 0
    %1570 = vmatpush1.bf16.msra.mxu0 0
    %1571 = vmatprep.subr.bf16.mxu0 0
    %1572 = vmatpush1.bf16.msra.mxu0 0
    %1573 = vmatprep.subr.bf16.mxu0 0
    %1574 = vmatpush1.bf16.msra.mxu0 0
    %1575 = vmatprep.subr.bf16.mxu0 0
    %1576 = vmatpush1.bf16.msra.mxu0 0
    %1577 = vmatprep.subr.bf16.mxu0 0
    %1578 = vmatpush1.bf16.msra.mxu0 0
    %1579 = vmatprep.subr.bf16.mxu0 0
    %1580 = vmatpush1.bf16.msra.mxu0 0
    %1581 = vmatprep.subr.bf16.mxu0 0
    %1582 = vmatpush1.bf16.msra.mxu0 0
    %1583 = vmatprep.subr.bf16.mxu0 0
    %1584 = vmatpush1.bf16.msra.mxu0 0
    %1585 = vmatprep.subr.bf16.mxu0 0
    %1586 = vmatpush1.bf16.msra.mxu0 0
    %1587 = vmatprep.subr.bf16.mxu0 0
    %1588 = vmatpush1.bf16.msra.mxu0 0
    %1589 = vmatprep.subr.bf16.mxu0 0
    %1590 = vmatpush1.bf16.msra.mxu0 0
    %1591 = vmatprep.subr.bf16.mxu0 0
    %1592 = vmatpush1.bf16.msra.mxu0 0
    %1593 = vmatprep.subr.bf16.mxu0 0
    %1594 = vmatpush1.bf16.msra.mxu0 0
    %1595 = vmatprep.subr.bf16.mxu0 0
    %1596 = vmatpush1.bf16.msra.mxu0 0
    %1597 = vmatprep.mubr.bf16.mxu0 0
    %1598 = vmatmul.mubr.bf16.gmra.mrb[0].mxu0 %v1560
    %v1599 = vpop.f32.mrb[0].mxu0
    %v1600 = vadd.f32 0.0, %v1599
    %v1601 = vpop.f32.mrb[0].mxu0
    %v1602 = vpop.f32.mrb[0].mxu0
    %v1603 = vpop.f32.mrb[0].mxu0
    %1604 = vdwg.mxu0
    %1605 = vrot.lane.b32.xlu0 %v1162, 80
    %v1606 = vpop.permute.xlu0 %1605
    %v1608 = vsel %vm384, %v1556, 0
    %v1611 = vsel %vm415, %v1606, 0
    %1613 = vmatprep.subr.bf16.mxu0 0
    %1614 = vmatpush1.bf16.msra.mxu0 %v1611
    %1615 = vmatprep.subr.bf16.mxu0 0
    %1616 = vmatpush1.bf16.msra.mxu0 0
    %1617 = vmatprep.subr.bf16.mxu0 0
    %1618 = vmatpush1.bf16.msra.mxu0 0
    %1619 = vmatprep.subr.bf16.mxu0 0
    %1620 = vmatpush1.bf16.msra.mxu0 0
    %1621 = vmatprep.subr.bf16.mxu0 0
    %1622 = vmatpush1.bf16.msra.mxu0 0
    %1623 = vmatprep.subr.bf16.mxu0 0
    %1624 = vmatpush1.bf16.msra.mxu0 0
    %1625 = vmatprep.subr.bf16.mxu0 0
    %1626 = vmatpush1.bf16.msra.mxu0 0
    %1627 = vmatprep.subr.bf16.mxu0 0
    %1628 = vmatpush1.bf16.msra.mxu0 0
    %1629 = vmatprep.subr.bf16.mxu0 0
    %1630 = vmatpush1.bf16.msra.mxu0 0
    %1631 = vmatprep.subr.bf16.mxu0 0
    %1632 = vmatpush1.bf16.msra.mxu0 0
    %1633 = vmatprep.subr.bf16.mxu0 0
    %1634 = vmatpush1.bf16.msra.mxu0 0
    %1635 = vmatprep.subr.bf16.mxu0 0
    %1636 = vmatpush1.bf16.msra.mxu0 0
    %1637 = vmatprep.subr.bf16.mxu0 0
    %1638 = vmatpush1.bf16.msra.mxu0 0
    %1639 = vmatprep.subr.bf16.mxu0 0
    %1640 = vmatpush1.bf16.msra.mxu0 0
    %1641 = vmatprep.subr.bf16.mxu0 0
    %1642 = vmatpush1.bf16.msra.mxu0 0
    %1643 = vmatprep.subr.bf16.mxu0 0
    %1644 = vmatpush1.bf16.msra.mxu0 0
    %1645 = vmatprep.mubr.bf16.mxu0 0
    %1646 = vmatmul.mubr.bf16.gmra.mrb[0].mxu0 %v1608
    %v1647 = vpop.f32.mrb[0].mxu0
    %v1648 = vadd.f32 0.0, %v1647
    %v1649 = vpop.f32.mrb[0].mxu0
    %v1650 = vpop.f32.mrb[0].mxu0
    %v1651 = vpop.f32.mrb[0].mxu0
    %1652 = vdwg.mxu0
    %v1653 = vpack.c.bf16 %v1648, %v1600
    %v1654 = vpack.c.bf16 %v1158, %v1157
    %v1656 = vsel %vm47, %v1653, 0
    %1658 = vmatprep.subr.bf16.mxu0 0
    %1659 = vmatpush1.bf16.msra.mxu0 %v1654
    %1660 = vmatprep.subr.bf16.mxu0 0
    %1661 = vmatpush1.bf16.msra.mxu0 0
    %1662 = vmatprep.subr.bf16.mxu0 0
    %1663 = vmatpush1.bf16.msra.mxu0 0
    %1664 = vmatprep.subr.bf16.mxu0 0
    %1665 = vmatpush1.bf16.msra.mxu0 0
    %1666 = vmatprep.subr.bf16.mxu0 0
    %1667 = vmatpush1.bf16.msra.mxu0 0
    %1668 = vmatprep.subr.bf16.mxu0 0
    %1669 = vmatpush1.bf16.msra.mxu0 0
    %1670 = vmatprep.subr.bf16.mxu0 0
    %1671 = vmatpush1.bf16.msra.mxu0 0
    %1672 = vmatprep.subr.bf16.mxu0 0
    %1673 = vmatpush1.bf16.msra.mxu0 0
    %1674 = vmatprep.subr.bf16.mxu0 0
    %1675 = vmatpush1.bf16.msra.mxu0 0
    %1676 = vmatprep.subr.bf16.mxu0 0
    %1677 = vmatpush1.bf16.msra.mxu0 0
    %1678 = vmatprep.subr.bf16.mxu0 0
    %1679 = vmatpush1.bf16.msra.mxu0 0
    %1680 = vmatprep.subr.bf16.mxu0 0
    %1681 = vmatpush1.bf16.msra.mxu0 0
    %1682 = vmatprep.subr.bf16.mxu0 0
    %1683 = vmatpush1.bf16.msra.mxu0 0
    %1684 = vmatprep.subr.bf16.mxu0 0
    %1685 = vmatpush1.bf16.msra.mxu0 0
    %1686 = vmatprep.subr.bf16.mxu0 0
    %1687 = vmatpush1.bf16.msra.mxu0 0
    %1688 = vmatprep.subr.bf16.mxu0 0
    %1689 = vmatpush1.bf16.msra.mxu0 0
    %1690 = vmatprep.mubr.bf16.mxu0 0
    %1691 = vmatmul.mubr.bf16.gmra.mrb[0].mxu0 %v1656
    %v1692 = vpop.f32.mrb[0].mxu0
    %v1693 = vadd.f32 0.0, %v1692
    %v1694 = vpop.f32.mrb[0].mxu0
    %v1695 = vpop.f32.mrb[0].mxu0
    %v1696 = vadd.f32 0.0, %v1695
    %v1697 = vpop.f32.mrb[0].mxu0
    %1698 = vdwg.mxu0
    %v1699 = vadd.f32 %v1421, %v1693
    %v1700 = vadd.f32 %v1424, %v1696
    %v1701 = vld [vmem:[#allocation5 + $0x158] sm:$0x1]
    %v1702 = vlaneseq
    %v1703 = vshrl.u32 %v1702, 7
    %v1704 = vsub.s32 0, %v1703
    %v1705 = vrot.slane %v1701, %v1704
    %v1706 = vadd.f32 %v1699, %v1705
    %v1707 = vadd.f32 %v1700, %v1705
    %v1708 = vadd.f32 %v1040, %v1706
    %v1709 = vadd.f32 %v1041, %v1707
    %v1710 = vld [vmem:[#allocation5 + $0x160] sm:$0x1]
    %v1711 = vld [vmem:[#allocation5 + $0x168] sm:$0x1]
    %v1712 = vsel %vm125, %v1708, 0.0
    %1713 = vadd.xlane.f32.xlu0 %v1712
    %v1714 = vpop.xlane.xlu0 %1713
    %v1715 = vsel %vm125, %v1709, 0.0
    %1716 = vadd.xlane.f32.xlu0 %v1715
    %v1717 = vpop.xlane.xlu0 %1716
    %v1718 = vmul.f32 %v1714, %v132
    %v1719 = vmul.f32 %v1717, %v132
    %v1720 = vsub.f32 %v1708, %v1718
    %v1721 = vsub.f32 %v1709, %v1719
    %v1722 = vmul.f32 %v1720, %v1720
    %v1723 = vmul.f32 %v1721, %v1721
    %v1724 = vsel %vm125, %v1722, 0.0
    %1725 = vadd.xlane.f32.xlu0 %v1724
    %v1726 = vpop.xlane.xlu0 %1725
    %v1727 = vsel %vm125, %v1723, 0.0
    %1728 = vadd.xlane.f32.xlu0 %v1727
    %v1729 = vpop.xlane.xlu0 %1728
    %v1730 = vmul.f32 %v1726, %v132
    %v1731 = vmul.f32 %v1729, %v132
    %v1732 = vadd.f32 %v1730, 1e-08
    %v1733 = vadd.f32 %v1731, 1e-08
    %v1734 = vrsqrt.pop %v1732
    %v1735 = vrsqrt.pop %v1733
    %v1736 = vmul.f32 %v1720, %v1734
    %v1737 = vmul.f32 %v1721, %v1735
    %v1738 = vlaneseq
    %v1739 = vshrl.u32 %v1738, 7
    %v1740 = vsub.s32 0, %v1739
    %v1741 = vrot.slane %v1710, %v1740
    %v1742 = vmul.f32 %v1736, %v1741
    %v1743 = vmul.f32 %v1737, %v1741
    %v1744 = vlaneseq
    %v1745 = vshrl.u32 %v1744, 7
    %v1746 = vsub.s32 0, %v1745
    %v1747 = vrot.slane %v1711, %v1746
    %v1748 = vadd.f32 %v1742, %v1747
    %v1749 = vadd.f32 %v1743, %v1747
    %v1750 = vld [vmem:[#allocation5 + $0x170] sm:$0xff]
    %v1751 = vld [vmem:[#allocation5 + $0x178] sm:$0xff]
    %v1752 = vld [vmem:[#allocation5 + $0x180] sm:$0xff]
    %v1753 = vld [vmem:[#allocation5 + $0x188] sm:$0xff]
    %v1754 = vld [vmem:[#allocation5 + $0x190] sm:$0x1]
    %v1755 = vpack.c.bf16 %v1749, %v1748
    %v1756 = vpack.c.bf16 %v1751, %v1750
    %v1757 = vpack.c.bf16 %v1753, %v1752
    %v1758 = vlaneseq
    %v1759 = vshrl.u32 %v1758, 7
    %v1760 = vsub.s32 0, %v1759
    %v1761 = vrot.slane %v1754, %v1760
    %v1763 = vsel %vm125, %v1755, 0
    %1765 = vmatprep.subr.bf16.mxu0 0
    %1766 = vmatpush1.bf16.msra.mxu0 %v1756
    %1767 = vmatprep.subr.bf16.mxu0 0
    %1768 = vmatpush1.bf16.msra.mxu0 %v1757
    %1769 = vmatprep.subr.bf16.mxu0 0
    %1770 = vmatpush1.bf16.msra.mxu0 0
    %1771 = vmatprep.subr.bf16.mxu0 0
    %1772 = vmatpush1.bf16.msra.mxu0 0
    %1773 = vmatprep.subr.bf16.mxu0 0
    %1774 = vmatpush1.bf16.msra.mxu0 0
    %1775 = vmatprep.subr.bf16.mxu0 0
    %1776 = vmatpush1.bf16.msra.mxu0 0
    %1777 = vmatprep.subr.bf16.mxu0 0
    %1778 = vmatpush1.bf16.msra.mxu0 0
    %1779 = vmatprep.subr.bf16.mxu0 0
    %1780 = vmatpush1.bf16.msra.mxu0 0
    %1781 = vmatprep.subr.bf16.mxu0 0
    %1782 = vmatpush1.bf16.msra.mxu0 0
    %1783 = vmatprep.subr.bf16.mxu0 0
    %1784 = vmatpush1.bf16.msra.mxu0 0
    %1785 = vmatprep.subr.bf16.mxu0 0
    %1786 = vmatpush1.bf16.msra.mxu0 0
    %1787 = vmatprep.subr.bf16.mxu0 0
    %1788 = vmatpush1.bf16.msra.mxu0 0
    %1789 = vmatprep.subr.bf16.mxu0 0
    %1790 = vmatpush1.bf16.msra.mxu0 0
    %1791 = vmatprep.subr.bf16.mxu0 0
    %1792 = vmatpush1.bf16.msra.mxu0 0
    %1793 = vmatprep.subr.bf16.mxu0 0
    %1794 = vmatpush1.bf16.msra.mxu0 0
    %1795 = vmatprep.subr.bf16.mxu0 0
    %1796 = vmatpush1.bf16.msra.mxu0 0
    %1797 = vmatprep.mubr.bf16.mxu0 0
    %1798 = vmatmul.mubr.bf16.gmra.mrb[0].mxu0 %v1763
    %v1799 = vpop.f32.mrb[0].mxu0
    %v1800 = vadd.f32 %v1761, %v1799
    %v1801 = vpop.f32.mrb[0].mxu0
    %v1802 = vpop.f32.mrb[0].mxu0
    %v1803 = vadd.f32 %v1761, %v1802
    %v1804 = vpop.f32.mrb[0].mxu0
    %1805 = vdwg.mxu0
    %v1806 = vmax.f32 %v1800, 0.0
    %v1807 = vmax.f32 %v1803, 0.0
    %v1808 = vld [vmem:[#allocation5 + $0x198] sm:$0xff]
    %v1809 = vld [vmem:[#allocation5 + $0x1a0] sm:$0xff]
    %v1810 = vld [vmem:[#allocation5 + $0x1a8] sm:$0xff]
    %v1811 = vld [vmem:[#allocation5 + $0x1b0] sm:$0xff]
    %v1812 = vld [vmem:[#allocation5 + $0x1b8] sm:$0xff]
    %v1813 = vld [vmem:[#allocation5 + $0x1c0] sm:$0xff]
    %v1814 = vld [vmem:[#allocation5 + $0x1c8] sm:$0xff]
    %v1815 = vld [vmem:[#allocation5 + $0x1d0] sm:$0xff]
    %v1816 = vld [vmem:[#allocation5 + $0x1d8] sm:$0x1]
    %v1817 = vpack.c.bf16 %v1807, %v1806
    %v1818 = vpack.c.bf16 %v1809, %v1808
    %v1819 = vpack.c.bf16 %v1811, %v1810
    %v1820 = vpack.c.bf16 %v1813, %v1812
    %v1821 = vpack.c.bf16 %v1815, %v1814
    %v1822 = vlaneseq
    %v1823 = vshrl.u32 %v1822, 7
    %v1824 = vsub.s32 0, %v1823
    %v1825 = vrot.slane %v1816, %v1824
    %v1827 = vsel %vm953, %v1817, 0
    %1829 = vmatprep.subr.bf16.mxu0 0
    %1830 = vmatpush1.bf16.msra.mxu0 %v1818
    %1831 = vmatprep.subr.bf16.mxu0 0
    %1832 = vmatpush1.bf16.msra.mxu0 %v1819
    %1833 = vmatprep.subr.bf16.mxu0 0
    %1834 = vmatpush1.bf16.msra.mxu0 %v1820
    %1835 = vmatprep.subr.bf16.mxu0 0
    %1836 = vmatpush1.bf16.msra.mxu0 %v1821
    %1837 = vmatprep.subr.bf16.mxu0 0
    %1838 = vmatpush1.bf16.msra.mxu0 0
    %1839 = vmatprep.subr.bf16.mxu0 0
    %1840 = vmatpush1.bf16.msra.mxu0 0
    %1841 = vmatprep.subr.bf16.mxu0 0
    %1842 = vmatpush1.bf16.msra.mxu0 0
    %1843 = vmatprep.subr.bf16.mxu0 0
    %1844 = vmatpush1.bf16.msra.mxu0 0
    %1845 = vmatprep.subr.bf16.mxu0 0
    %1846 = vmatpush1.bf16.msra.mxu0 0
    %1847 = vmatprep.subr.bf16.mxu0 0
    %1848 = vmatpush1.bf16.msra.mxu0 0
    %1849 = vmatprep.subr.bf16.mxu0 0
    %1850 = vmatpush1.bf16.msra.mxu0 0
    %1851 = vmatprep.subr.bf16.mxu0 0
    %1852 = vmatpush1.bf16.msra.mxu0 0
    %1853 = vmatprep.subr.bf16.mxu0 0
    %1854 = vmatpush1.bf16.msra.mxu0 0
    %1855 = vmatprep.subr.bf16.mxu0 0
    %1856 = vmatpush1.bf16.msra.mxu0 0
    %1857 = vmatprep.subr.bf16.mxu0 0
    %1858 = vmatpush1.bf16.msra.mxu0 0
    %1859 = vmatprep.subr.bf16.mxu0 0
    %1860 = vmatpush1.bf16.msra.mxu0 0
    %1861 = vmatprep.mubr.bf16.mxu0 0
    %1862 = vmatmul.mubr.bf16.gmra.mrb[0].mxu0 %v1827
    %v1863 = vpop.f32.mrb[0].mxu0
    %v1864 = vadd.f32 %v1825, %v1863
    %v1865 = vpop.f32.mrb[0].mxu0
    %v1866 = vpop.f32.mrb[0].mxu0
    %v1867 = vadd.f32 %v1825, %v1866
    %v1868 = vpop.f32.mrb[0].mxu0
    %1869 = vdwg.mxu0
    %v1870 = vadd.f32 %v1748, %v1864
    %v1871 = vadd.f32 %v1749, %v1867
    %v1872 = vmul.f32 %v1870, %v58
    %v1873 = vmul.f32 %v1871, %v59
    %v1874 = vld [vmem:[#allocation5 + $0x1e0] sm:$0x1]
    %v1875 = vld [vmem:[#allocation5 + $0x1e8] sm:$0x1]
    %v1876 = vsel %vm125, %v1872, 0.0
    %1877 = vadd.xlane.f32.xlu0 %v1876
    %v1878 = vpop.xlane.xlu0 %1877
    %v1879 = vsel %vm125, %v1873, 0.0
    %1880 = vadd.xlane.f32.xlu0 %v1879
    %v1881 = vpop.xlane.xlu0 %1880
    %v1882 = vmul.f32 %v1878, %v132
    %v1883 = vmul.f32 %v1881, %v132
    %v1884 = vsub.f32 %v1872, %v1882
    %v1885 = vsub.f32 %v1873, %v1883
    %v1886 = vmul.f32 %v1884, %v1884
    %v1887 = vmul.f32 %v1885, %v1885
    %v1888 = vsel %vm125, %v1886, 0.0
    %1889 = vadd.xlane.f32.xlu0 %v1888
    %v1890 = vpop.xlane.xlu0 %1889
    %v1891 = vsel %vm125, %v1887, 0.0
    %1892 = vadd.xlane.f32.xlu0 %v1891
    %v1893 = vpop.xlane.xlu0 %1892
    %v1894 = vmul.f32 %v1890, %v132
    %v1895 = vmul.f32 %v1893, %v132
    %v1896 = vadd.f32 %v1894, 1e-08
    %v1897 = vadd.f32 %v1895, 1e-08
    %v1898 = vrsqrt.pop %v1896
    %v1899 = vrsqrt.pop %v1897
    %v1900 = vmul.f32 %v1884, %v1898
    %v1901 = vmul.f32 %v1885, %v1899
    %v1902 = vlaneseq
    %v1903 = vshrl.u32 %v1902, 7
    %v1904 = vsub.s32 0, %v1903
    %v1905 = vrot.slane %v1874, %v1904
    %v1906 = vmul.f32 %v1900, %v1905
    %v1907 = vmul.f32 %v1901, %v1905
    %v1908 = vlaneseq
    %v1909 = vshrl.u32 %v1908, 7
    %v1910 = vsub.s32 0, %v1909
    %v1911 = vrot.slane %v1875, %v1910
    %v1912 = vadd.f32 %v1906, %v1911
    %v1913 = vadd.f32 %v1907, %v1911
    %v1914 = vld [vmem:[#allocation5 + $0x1f0] sm:$0xf]
    %v1915 = vld [vmem:[#allocation5 + $0x1f8] sm:$0x1]
    %v1916 = vpack.c.bf16 %v46, %v46
    %v1917 = vpack.c.bf16 %v1914, %v1914
    %v1918 = vlaneseq
    %v1919 = vshrl.u32 %v1918, 7
    %v1920 = vsub.s32 0, %v1919
    %v1921 = vrot.slane %v1915, %v1920
    %vm1922 = vcmask 31744
    %v1924 = vsel %vm1922, %v1916, 0
    %vm1926 = vcmask 1041408
    %v1928 = vsel %vm1926, %v1917, 0
    %1930 = vmatprep.subr.bf16.mxu0 0
    %1931 = vmatpush1.bf16.msra.mxu0 %v1928
    %1932 = vmatprep.subr.bf16.mxu0 0
    %1933 = vmatpush1.bf16.msra.mxu0 0
    %1934 = vmatprep.subr.bf16.mxu0 0
    %1935 = vmatpush1.bf16.msra.mxu0 0
    %1936 = vmatprep.subr.bf16.mxu0 0
    %1937 = vmatpush1.bf16.msra.mxu0 0
    %1938 = vmatprep.subr.bf16.mxu0 0
    %1939 = vmatpush1.bf16.msra.mxu0 0
    %1940 = vmatprep.subr.bf16.mxu0 0
    %1941 = vmatpush1.bf16.msra.mxu0 0
    %1942 = vmatprep.subr.bf16.mxu0 0
    %1943 = vmatpush1.bf16.msra.mxu0 0
    %1944 = vmatprep.subr.bf16.mxu0 0
    %1945 = vmatpush1.bf16.msra.mxu0 0
    %1946 = vmatprep.subr.bf16.mxu0 0
    %1947 = vmatpush1.bf16.msra.mxu0 0
    %1948 = vmatprep.subr.bf16.mxu0 0
    %1949 = vmatpush1.bf16.msra.mxu0 0
    %1950 = vmatprep.subr.bf16.mxu0 0
    %1951 = vmatpush1.bf16.msra.mxu0 0
    %1952 = vmatprep.subr.bf16.mxu0 0
    %1953 = vmatpush1.bf16.msra.mxu0 0
    %1954 = vmatprep.subr.bf16.mxu0 0
    %1955 = vmatpush1.bf16.msra.mxu0 0
    %1956 = vmatprep.subr.bf16.mxu0 0
    %1957 = vmatpush1.bf16.msra.mxu0 0
    %1958 = vmatprep.subr.bf16.mxu0 0
    %1959 = vmatpush1.bf16.msra.mxu0 0
    %1960 = vmatprep.subr.bf16.mxu0 0
    %1961 = vmatpush1.bf16.msra.mxu0 0
    %1962 = vmatprep.mubr.bf16.mxu0 0
    %1963 = vmatmul.mubr.bf16.gmra.mrb[0].mxu0 %v1924
    %v1964 = vpop.f32.mrb[0].mxu0
    %v1965 = vadd.f32 %v1921, %v1964
    %v1966 = vpop.f32.mrb[0].mxu0
    %v1967 = vpop.f32.mrb[0].mxu0
    %v1968 = vpop.f32.mrb[0].mxu0
    %1969 = vdwg.mxu0
    %v1970 = vmax.f32 %v1965, 0.0
    %v1973 = vrot.slane %v1913, 7
    %v1977 = vrot.slane %v1970, 1
    %1978 = vrot.lane.b32.xlu0 %v1977, 32
    %v1979 = vpop.permute.xlu0 %1978
    %v1981 = vsel %vm125, %v1912, %v1979
    %v1982 = vsel %vm125, %v1973, %v1979
    %v1983 = vld [vmem:[#allocation5 + $0x200] sm:$0xff]
    %v1984 = vld [vmem:[#allocation5 + $0x208] sm:$0xff]
    %v1985 = vld [vmem:[#allocation5 + $0x210] sm:$0xff]
    %v1986 = vld [vmem:[#allocation5 + $0x218] sm:$0xff]
    %v1987 = vld [vmem:[#allocation5 + $0x220] sm:$0xff]
    %v1988 = vld [vmem:[#allocation5 + $0x228] sm:$0xff]
    %v1989 = vld [vmem:[#allocation5 + $0x230] sm:$0xff]
    %v1990 = vld [vmem:[#allocation5 + $0x238] sm:$0xff]
    %v1991 = vld [vmem:[#allocation5 + $0x240] sm:$0x1]
    %v1992 = vpack.c.bf16 %v1982, %v1981
    %v1993 = vpack.c.bf16 %v1984, %v1983
    %v1994 = vpack.c.bf16 %v1986, %v1985
    %v1995 = vpack.c.bf16 %v1988, %v1987
    %v1996 = vpack.c.bf16 %v1990, %v1989
    %v1997 = vlaneseq
    %v1998 = vshrl.u32 %v1997, 7
    %v1999 = vsub.s32 0, %v1998
    %v2000 = vrot.slane %v1991, %v1999
    %v2002 = vshrl.u32 %v1992, 16
    %v2004 = vrot.slane %v2002, 3
    %v2005 = vshll.u32 %v1992, 16
    %v2007 = vrot.slane %v2005, 4
    %v2008 = vor.u32 %v2004, %v2007
    %v2010 = vsel %vm953, %v2008, 0
    %2012 = vmatprep.subr.bf16.mxu0 0
    %2013 = vmatpush1.bf16.msra.mxu0 %v1993
    %2014 = vmatprep.subr.bf16.mxu0 0
    %2015 = vmatpush1.bf16.msra.mxu0 %v1994
    %2016 = vmatprep.subr.bf16.mxu0 0
    %2017 = vmatpush1.bf16.msra.mxu0 %v1995
    %2018 = vmatprep.subr.bf16.mxu0 0
    %2019 = vmatpush1.bf16.msra.mxu0 %v1996
    %2020 = vmatprep.subr.bf16.mxu0 0
    %2021 = vmatpush1.bf16.msra.mxu0 0
    %2022 = vmatprep.subr.bf16.mxu0 0
    %2023 = vmatpush1.bf16.msra.mxu0 0
    %2024 = vmatprep.subr.bf16.mxu0 0
    %2025 = vmatpush1.bf16.msra.mxu0 0
    %2026 = vmatprep.subr.bf16.mxu0 0
    %2027 = vmatpush1.bf16.msra.mxu0 0
    %2028 = vmatprep.subr.bf16.mxu0 0
    %2029 = vmatpush1.bf16.msra.mxu0 0
    %2030 = vmatprep.subr.bf16.mxu0 0
    %2031 = vmatpush1.bf16.msra.mxu0 0
    %2032 = vmatprep.subr.bf16.mxu0 0
    %2033 = vmatpush1.bf16.msra.mxu0 0
    %2034 = vmatprep.subr.bf16.mxu0 0
    %2035 = vmatpush1.bf16.msra.mxu0 0
    %2036 = vmatprep.subr.bf16.mxu0 0
    %2037 = vmatpush1.bf16.msra.mxu0 0
    %2038 = vmatprep.subr.bf16.mxu0 0
    %2039 = vmatpush1.bf16.msra.mxu0 0
    %2040 = vmatprep.subr.bf16.mxu0 0
    %2041 = vmatpush1.bf16.msra.mxu0 0
    %2042 = vmatprep.subr.bf16.mxu0 0
    %2043 = vmatpush1.bf16.msra.mxu0 0
    %2044 = vmatprep.mubr.bf16.mxu0 0
    %2045 = vmatmul.mubr.bf16.gmra.mrb[0].mxu0 %v2010
    %v2046 = vpop.f32.mrb[0].mxu0
    %v2047 = vadd.f32 %v2000, %v2046
    %v2048 = vpop.f32.mrb[0].mxu0
    %v2049 = vpop.f32.mrb[0].mxu0
    %v2050 = vpop.f32.mrb[0].mxu0
    %2051 = vdwg.mxu0
    %v2052 = vmax.f32 %v2047, 0.0
    %vm2053 = vcmask 517120
    %2054 = vst.msk [vmem:[#allocation7] sm:$0x3] %vm2053, %v2052
    // Predicated region
    $region22: #{tpu_custom_call.1} parent=1 // pred_check
      _
    $region23: #{tpu_custom_call.1} parent=1 // pred_check_branch
      %2056 = sbr.rel (0) target = $region25
    $region24: #{tpu_custom_call.1} parent=1 // pred_region
      %s2058 = ssub.s32 32, 32
      %2059 = vsyncadd [#allocation4], %s2058
      %s2061 = sshll.u32 [#allocation7], 4
      %s2062 = int_to_ptr.vmem [resolvable:$true] %s2061
      %2064 = dma.vmem_to_hbm [thread:$0]  %s2062, 32, %s3, [#allocation4]
    $region25: #{tpu_custom_call.1} parent=1 // pred_fallthru
      _
    // Predicated region
    $region26: #{tpu_custom_call.1} parent=1 // pred_check
      _
    $region27: #{tpu_custom_call.1} parent=1 // pred_check_branch
      %2066 = sbr.rel (0) target = $region29
    $region28: #{tpu_custom_call.1} parent=1 // pred_region
      %2067 = dma.done [#allocation4], 32
    $region29: #{tpu_custom_call.1} parent=1 // pred_fallthru
      _
    %2068 = vsyncpa [#allocation3], 1
    %2069 = vsyncpa [#allocation6], 1
    %2070 = vsyncpa [#allocation4], 1

</llo_original>
